<compile_context>
chip_gen: v6e
topology: v6e:2x2x1
jax: 0.10.0
libtpu: 0.0.40
codegen_flags: <defaults>
</compile_context>

<pallas_src>
import functools

import jax
import jax.numpy as jnp
from jax.experimental import pallas as pl
from jax.experimental.pallas import tpu as pltpu


NUM_BLOCKS = 2  # SoftQNetwork default num_blocks


def _round_up(x, m):
    return (x + m - 1) // m * m


def _choose_batch_tile(B, cap=1024):
    """Sublane-aligned batch tile.

    B <= 8: single full-batch tile (block dim == array dim satisfies tiling
    rules even when B is not a multiple of 8).
    B  > 8: aim for >= 2 grid steps so v7x's two TensorCores both get work,
    capped at 1024 to amortize the ~0.35us per-step pipeline overhead while
    keeping VMEM use at a few MiB on every generation (v5e/v6e/v7x).
    """
    if B <= 8:
        return B
    return min(_round_up((B + 1) // 2, 8), cap)


def _soft_q_kernel(x_ref, w_in_ref, w_blk_ref, misc_ref, o_ref, *,
                   num_critics, num_blocks):
    f32 = jnp.float32
    bf16 = jnp.bfloat16

    # misc slab row layout per critic (f32):
    #   0           : b_in
    #   1+2i / 2+2i : b1_i / b2_i
    #   1+2*nb      : w_out row (H,)
    #   next row    : b_out scalar at lane 0
    row_w_out = 1 + 2 * num_blocks
    row_b_out = row_w_out + 1

    x = x_ref[...].astype(bf16)                            # (TB, obs+act)

    for c in range(num_critics):                           # unrolled, static
        misc_c = misc_ref[c]                               # (n_rows, H) f32

        # Input projection: bf16 MXU matmul, f32 accumulation.
        h = jnp.dot(x, w_in_ref[c], preferred_element_type=f32)
        h = jnp.maximum(h + misc_c[0:1, :], 0.0)

        # Residual MLP blocks (unrolled at trace time).
        for i in range(num_blocks):
            w1 = w_blk_ref[c, 2 * i]                       # (H, H) bf16
            w2 = w_blk_ref[c, 2 * i + 1]                   # (H, H) bf16
            b1 = misc_c[1 + 2 * i:2 + 2 * i, :]            # (1, H) f32
            b2 = misc_c[2 + 2 * i:3 + 2 * i, :]            # (1, H) f32
            y = jnp.dot(h.astype(bf16), w1, preferred_element_type=f32) + b1
            y = jnp.maximum(y, 0.0)
            y = jnp.dot(y.astype(bf16), w2, preferred_element_type=f32) + b2
            h = jnp.maximum(h + y, 0.0)

        # Final Linear(hidden, 1): VPU multiply + lane reduction.
        w_out = misc_c[row_w_out:row_w_out + 1, :]         # (1, H)
        q = jnp.sum(h * w_out, axis=-1, keepdims=True)     # (TB, 1)
        b_out = misc_c[row_b_out:row_b_out + 1, 0:1]       # (1, 1)
        o_ref[c, :, :] = (q + b_out).astype(o_ref.dtype)


def pack_params(params_list, *, hidden, num_blocks=NUM_BLOCKS):
    """Stack the parameters of C critics into 3 fused arrays (once per update).

    Returns:
      w_in  : (C, obs+act, H)     bf16
      w_blk : (C, 2*nb, H, H)     bf16
      misc  : (C, n_rows, H) f32  biases / w_out row / b_out scalar
    """
    bf16 = jnp.bfloat16
    row_w_out = 1 + 2 * num_blocks
    row_b_out = row_w_out + 1
    n_rows = _round_up(row_b_out + 1, 8)

    w_in = jnp.stack([p["w_in"].astype(bf16) for p in params_list], axis=0)
    w_blk = jnp.stack(
        [jnp.stack([p[f"w{j}_{i}"].astype(bf16)
                    for i in range(num_blocks) for j in (1, 2)], axis=0)
         for p in params_list], axis=0)

    miscs = []
    for p in params_list:
        m = jnp.zeros((n_rows, hidden), jnp.float32)
        m = m.at[0].set(p["b_in"][0])
        for i in range(num_blocks):
            m = m.at[1 + 2 * i].set(p[f"b1_{i}"][0])
            m = m.at[2 + 2 * i].set(p[f"b2_{i}"][0])
        m = m.at[row_w_out].set(p["w_out"][:, 0])
        m = m.at[row_b_out, 0].set(p["b_out"][0, 0])
        miscs.append(m)
    misc = jnp.stack(miscs, axis=0)
    return w_in, w_blk, misc


def soft_q_forward(state, action, packed, *, tile_cap=1024):
    """Fused forward for all C packed critics.  Returns (C, B, 1) f32."""
    w_in, w_blk, misc = packed
    B = state.shape[0]
    num_critics = w_in.shape[0]
    in_dim = w_in.shape[1]
    num_blocks = w_blk.shape[1] // 2
    assert state.shape[1] + action.shape[1] == in_dim

    # Fold the action into the MXU: one (B, obs+act) activation, one matmul.
    x = jnp.concatenate([state, action], axis=1)

    tb = _choose_batch_tile(B, tile_cap)
    grid = (pl.cdiv(B, tb),)

    kernel = functools.partial(_soft_q_kernel, num_critics=num_critics,
                               num_blocks=num_blocks)
    return pl.pallas_call(
        kernel,
        out_shape=jax.ShapeDtypeStruct((num_critics, B, 1), jnp.float32),
        grid=grid,
        in_specs=[
            pl.BlockSpec((tb, in_dim), lambda i: (i, 0)),
            # Weights: constant index maps -> fetched once, VMEM-resident
            # across all batch tiles.
            pl.BlockSpec(w_in.shape, lambda i: (0, 0, 0)),
            pl.BlockSpec(w_blk.shape, lambda i: (0, 0, 0, 0)),
            pl.BlockSpec(misc.shape, lambda i: (0, 0, 0)),
        ],
        out_specs=pl.BlockSpec((num_critics, tb, 1), lambda i: (0, i, 0)),
        compiler_params=pltpu.CompilerParams(
            dimension_semantics=("parallel",)),
    )(x, w_in, w_blk, misc)


def init_params(key, obs_dim, act_dim, hidden, num_blocks=NUM_BLOCKS):
    """Deterministic init (uniform +-1/sqrt(fan_in), like nn.Linear)."""
    in_dim = obs_dim + act_dim

    def linear(k, fan_in, fan_out):
        kw, kb = jax.random.split(k)
        bound = 1.0 / jnp.sqrt(jnp.float32(fan_in))
        w = jax.random.uniform(kw, (fan_in, fan_out), jnp.float32, -bound, bound)
        b = jax.random.uniform(kb, (1, fan_out), jnp.float32, -bound, bound)
        return w, b

    keys = jax.random.split(key, 2 + 2 * num_blocks)
    params = {}
    params["w_in"], params["b_in"] = linear(keys[0], in_dim, hidden)
    for i in range(num_blocks):
        params[f"w1_{i}"], params[f"b1_{i}"] = linear(keys[1 + 2 * i], hidden, hidden)
        params[f"w2_{i}"], params[f"b2_{i}"] = linear(keys[2 + 2 * i], hidden, hidden)
    params["w_out"], params["b_out"] = linear(keys[-1], hidden, 1)
    return params


def soft_q_reference(state, action, params, *, num_blocks=NUM_BLOCKS):
    """Pure-JAX reference for one critic, mirroring the kernel's precision
    policy (bf16 matmul operands, f32 accumulation / elementwise)."""
    bf16 = jnp.bfloat16
    f32 = jnp.float32
    x = jnp.concatenate([state, action], axis=1).astype(bf16)
    h = jnp.dot(x, params["w_in"].astype(bf16), preferred_element_type=f32)
    h = jnp.maximum(h + params["b_in"], 0.0)
    for i in range(num_blocks):
        y = jnp.dot(h.astype(bf16), params[f"w1_{i}"].astype(bf16),
                    preferred_element_type=f32) + params[f"b1_{i}"]
        y = jnp.maximum(y, 0.0)
        y = jnp.dot(y.astype(bf16), params[f"w2_{i}"].astype(bf16),
                    preferred_element_type=f32) + params[f"b2_{i}"]
        h = jnp.maximum(h + y, 0.0)
    q = jnp.sum(h * params["w_out"][:, 0][None, :], axis=-1, keepdims=True)
    return q + params["b_out"]


if __name__ == "__main__":
    # Small shapes consistent with the module: batch=8, obs_dim=24, act_dim=2,
    # hidden_size=256 (module default), num_blocks=2, twin critics fused.
    B, OBS, ACT, HIDDEN, NUM_CRITICS = 8, 24, 2, 256, 2

    key = jax.random.PRNGKey(0)
    k_s, k_a, k_p1, k_p2 = jax.random.split(key, 4)
    state = jax.random.normal(k_s, (B, OBS), jnp.float32)
    action = jax.random.uniform(k_a, (B, ACT), jnp.float32, -1.0, 1.0)
    params_list = [init_params(k, OBS, ACT, HIDDEN) for k in (k_p1, k_p2)]

    packed = pack_params(params_list, hidden=HIDDEN)
    packed = jax.tree_util.tree_map(jax.block_until_ready, packed)

    q = soft_q_forward(state, action, packed)          # (2, B, 1)
    q = jax.block_until_ready(q)
    assert q.shape == (NUM_CRITICS, B, 1)
    for c in range(NUM_CRITICS):
        q_ref = soft_q_reference(state, action, params_list[c])
        assert jnp.allclose(q[c], q_ref, atol=1e-4, rtol=1e-3), \
            f"critic {c} mismatch vs reference"

    # Multi-tile path (grid > 1, padded tail tile) on a slightly larger batch.
    B2 = 20
    k_s2, k_a2 = jax.random.split(jax.random.PRNGKey(1))
    state2 = jax.random.normal(k_s2, (B2, OBS), jnp.float32)
    action2 = jax.random.uniform(k_a2, (B2, ACT), jnp.float32, -1.0, 1.0)
    q2 = jax.block_until_ready(soft_q_forward(state2, action2, packed))
    assert q2.shape == (NUM_CRITICS, B2, 1)
    for c in range(NUM_CRITICS):
        q2_ref = soft_q_reference(state2, action2, params_list[c])
        assert jnp.allclose(q2[c], q2_ref, atol=1e-4, rtol=1e-3), \
            f"critic {c} mismatch vs reference (B={B2})"

    print("KERNEL_OK")
</pallas_src>

<mosaic_0001>
module attributes {stable_mosaic.version = 11 : i64} {
  func.func @_soft_q_kernel(%arg0: i32, %arg1: memref<8x26xf32, #tpu.memory_space<vmem>>, %arg2: memref<2x26x256xbf16, #tpu.memory_space<vmem>>, %arg3: memref<2x4x256x256xbf16, #tpu.memory_space<vmem>>, %arg4: memref<2x8x256xf32, #tpu.memory_space<vmem>>, %arg5: memref<2x8x1xf32, #tpu.memory_space<vmem>>) attributes {dimension_semantics = [#tpu.dimension_semantics<parallel>], iteration_bounds = array<i64: 1>, scalar_prefetch = 0 : i64, scratch_operands = 0 : i64, tpu.core_type = #tpu.core_type<tc>, window_params = [{transform_indices = @transform_0, window_bounds = array<i64: 8, 26>}, {pipeline_mode = #tpu.pipeline_mode<synchronous>, transform_indices = @transform_1, window_bounds = array<i64: 2, 26, 256>}, {pipeline_mode = #tpu.pipeline_mode<synchronous>, transform_indices = @transform_2, window_bounds = array<i64: 2, 4, 256, 256>}, {pipeline_mode = #tpu.pipeline_mode<synchronous>, transform_indices = @transform_3, window_bounds = array<i64: 2, 8, 256>}, {transform_indices = @transform_4, window_bounds = array<i64: 2, 8, 1>}]} {
    %c0 = arith.constant 0 : index
    %c0_0 = arith.constant 0 : index
    %0 = vector.load %arg1[%c0, %c0_0] : memref<8x26xf32, #tpu.memory_space<vmem>>, vector<8x26xf32>
    %1 = arith.truncf %0 : vector<8x26xf32> to vector<8x26xbf16>
    %c0_1 = arith.constant 0 : index
    %c0_2 = arith.constant 0 : index
    %c0_3 = arith.constant 0 : index
    %2 = vector.load %arg4[%c0_1, %c0_2, %c0_3] : memref<2x8x256xf32, #tpu.memory_space<vmem>>, vector<1x8x256xf32>
    %3 = vector.shape_cast %2 : vector<1x8x256xf32> to vector<8x256xf32>
    %c0_4 = arith.constant 0 : index
    %c0_5 = arith.constant 0 : index
    %c0_6 = arith.constant 0 : index
    %4 = vector.load %arg2[%c0_4, %c0_5, %c0_6] : memref<2x26x256xbf16, #tpu.memory_space<vmem>>, vector<1x26x256xbf16>
    %5 = vector.shape_cast %4 : vector<1x26x256xbf16> to vector<26x256xbf16>
    %cst = arith.constant dense<0.000000e+00> : vector<8x256xf32>
    %6 = tpu.matmul %1, %5, %cst {dimension_numbers = #tpu.dot_dimension_numbers<[1], [0], [0], [1], [0, 0, 1, 1], [], []>} : vector<8x26xbf16>, vector<26x256xbf16>, vector<8x256xf32> -> vector<8x256xf32>
    %7 = vector.extract_strided_slice %3 {offsets = [0, 0], sizes = [1, 256], strides = [1, 1]} : vector<8x256xf32> to vector<1x256xf32>
    %8 = vector.broadcast %7 : vector<1x256xf32> to vector<8x256xf32>
    %9 = arith.addf %6, %8 : vector<8x256xf32>
    %cst_7 = arith.constant 0.000000e+00 : f32
    %10 = vector.broadcast %cst_7 : f32 to vector<8x256xf32>
    %11 = arith.maximumf %9, %10 : vector<8x256xf32>
    %c0_8 = arith.constant 0 : index
    %c0_9 = arith.constant 0 : index
    %c0_10 = arith.constant 0 : index
    %c0_11 = arith.constant 0 : index
    %12 = vector.load %arg3[%c0_8, %c0_9, %c0_10, %c0_11] : memref<2x4x256x256xbf16, #tpu.memory_space<vmem>>, vector<1x1x256x256xbf16>
    %13 = vector.shape_cast %12 : vector<1x1x256x256xbf16> to vector<256x256xbf16>
    %c0_12 = arith.constant 0 : index
    %c1 = arith.constant 1 : index
    %c0_13 = arith.constant 0 : index
    %c0_14 = arith.constant 0 : index
    %14 = vector.load %arg3[%c0_12, %c1, %c0_13, %c0_14] : memref<2x4x256x256xbf16, #tpu.memory_space<vmem>>, vector<1x1x256x256xbf16>
    %15 = vector.shape_cast %14 : vector<1x1x256x256xbf16> to vector<256x256xbf16>
    %16 = vector.extract_strided_slice %3 {offsets = [1, 0], sizes = [1, 256], strides = [1, 1]} : vector<8x256xf32> to vector<1x256xf32>
    %17 = vector.extract_strided_slice %3 {offsets = [2, 0], sizes = [1, 256], strides = [1, 1]} : vector<8x256xf32> to vector<1x256xf32>
    %18 = arith.truncf %11 : vector<8x256xf32> to vector<8x256xbf16>
    %cst_15 = arith.constant dense<0.000000e+00> : vector<8x256xf32>
    %19 = tpu.matmul %18, %13, %cst_15 {dimension_numbers = #tpu.dot_dimension_numbers<[1], [0], [0], [1], [0, 0, 1, 1], [], []>} : vector<8x256xbf16>, vector<256x256xbf16>, vector<8x256xf32> -> vector<8x256xf32>
    %20 = vector.broadcast %16 : vector<1x256xf32> to vector<8x256xf32>
    %21 = arith.addf %19, %20 : vector<8x256xf32>
    %cst_16 = arith.constant 0.000000e+00 : f32
    %22 = vector.broadcast %cst_16 : f32 to vector<8x256xf32>
    %23 = arith.maximumf %21, %22 : vector<8x256xf32>
    %24 = arith.truncf %23 : vector<8x256xf32> to vector<8x256xbf16>
    %cst_17 = arith.constant dense<0.000000e+00> : vector<8x256xf32>
    %25 = tpu.matmul %24, %15, %cst_17 {dimension_numbers = #tpu.dot_dimension_numbers<[1], [0], [0], [1], [0, 0, 1, 1], [], []>} : vector<8x256xbf16>, vector<256x256xbf16>, vector<8x256xf32> -> vector<8x256xf32>
    %26 = vector.broadcast %17 : vector<1x256xf32> to vector<8x256xf32>
    %27 = arith.addf %25, %26 : vector<8x256xf32>
    %28 = arith.addf %11, %27 : vector<8x256xf32>
    %cst_18 = arith.constant 0.000000e+00 : f32
    %29 = vector.broadcast %cst_18 : f32 to vector<8x256xf32>
    %30 = arith.maximumf %28, %29 : vector<8x256xf32>
    %c0_19 = arith.constant 0 : index
    %c2 = arith.constant 2 : index
    %c0_20 = arith.constant 0 : index
    %c0_21 = arith.constant 0 : index
    %31 = vector.load %arg3[%c0_19, %c2, %c0_20, %c0_21] : memref<2x4x256x256xbf16, #tpu.memory_space<vmem>>, vector<1x1x256x256xbf16>
    %32 = vector.shape_cast %31 : vector<1x1x256x256xbf16> to vector<256x256xbf16>
    %c0_22 = arith.constant 0 : index
    %c3 = arith.constant 3 : index
    %c0_23 = arith.constant 0 : index
    %c0_24 = arith.constant 0 : index
    %33 = vector.load %arg3[%c0_22, %c3, %c0_23, %c0_24] : memref<2x4x256x256xbf16, #tpu.memory_space<vmem>>, vector<1x1x256x256xbf16>
    %34 = vector.shape_cast %33 : vector<1x1x256x256xbf16> to vector<256x256xbf16>
    %35 = vector.extract_strided_slice %3 {offsets = [3, 0], sizes = [1, 256], strides = [1, 1]} : vector<8x256xf32> to vector<1x256xf32>
    %36 = vector.extract_strided_slice %3 {offsets = [4, 0], sizes = [1, 256], strides = [1, 1]} : vector<8x256xf32> to vector<1x256xf32>
    %37 = arith.truncf %30 : vector<8x256xf32> to vector<8x256xbf16>
    %cst_25 = arith.constant dense<0.000000e+00> : vector<8x256xf32>
    %38 = tpu.matmul %37, %32, %cst_25 {dimension_numbers = #tpu.dot_dimension_numbers<[1], [0], [0], [1], [0, 0, 1, 1], [], []>} : vector<8x256xbf16>, vector<256x256xbf16>, vector<8x256xf32> -> vector<8x256xf32>
    %39 = vector.broadcast %35 : vector<1x256xf32> to vector<8x256xf32>
    %40 = arith.addf %38, %39 : vector<8x256xf32>
    %cst_26 = arith.constant 0.000000e+00 : f32
    %41 = vector.broadcast %cst_26 : f32 to vector<8x256xf32>
    %42 = arith.maximumf %40, %41 : vector<8x256xf32>
    %43 = arith.truncf %42 : vector<8x256xf32> to vector<8x256xbf16>
    %cst_27 = arith.constant dense<0.000000e+00> : vector<8x256xf32>
    %44 = tpu.matmul %43, %34, %cst_27 {dimension_numbers = #tpu.dot_dimension_numbers<[1], [0], [0], [1], [0, 0, 1, 1], [], []>} : vector<8x256xbf16>, vector<256x256xbf16>, vector<8x256xf32> -> vector<8x256xf32>
    %45 = vector.broadcast %36 : vector<1x256xf32> to vector<8x256xf32>
    %46 = arith.addf %44, %45 : vector<8x256xf32>
    %47 = arith.addf %30, %46 : vector<8x256xf32>
    %cst_28 = arith.constant 0.000000e+00 : f32
    %48 = vector.broadcast %cst_28 : f32 to vector<8x256xf32>
    %49 = arith.maximumf %47, %48 : vector<8x256xf32>
    %50 = vector.extract_strided_slice %3 {offsets = [5, 0], sizes = [1, 256], strides = [1, 1]} : vector<8x256xf32> to vector<1x256xf32>
    %51 = vector.broadcast %50 : vector<1x256xf32> to vector<8x256xf32>
    %52 = arith.mulf %49, %51 : vector<8x256xf32>
    %cst_29 = arith.constant dense<0.000000e+00> : vector<8xf32>
    %53 = vector.multi_reduction <add>, %52, %cst_29 [1] : vector<8x256xf32> to vector<8xf32>
    %54 = vector.shape_cast %53 : vector<8xf32> to vector<8x1xf32>
    %55 = vector.extract_strided_slice %3 {offsets = [6, 0], sizes = [1, 1], strides = [1, 1]} : vector<8x256xf32> to vector<1x1xf32>
    %56 = vector.broadcast %55 : vector<1x1xf32> to vector<8x1xf32>
    %57 = arith.addf %54, %56 : vector<8x1xf32>
    %c0_30 = arith.constant 0 : index
    %c0_31 = arith.constant 0 : index
    %c0_32 = arith.constant 0 : index
    %58 = vector.load %arg5[%c0_30, %c0_31, %c0_32] : memref<2x8x1xf32, #tpu.memory_space<vmem>>, vector<1x8x1xf32>
    %59 = vector.shape_cast %58 : vector<1x8x1xf32> to vector<8x1xf32>
    %60 = vector.shape_cast %57 : vector<8x1xf32> to vector<1x8x1xf32>
    tpu.vector_store %arg5[%c0_30, %c0_31, %c0_32], %60 {strides = array<i32>} : memref<2x8x1xf32, #tpu.memory_space<vmem>>, vector<1x8x1xf32>,
    %c1_33 = arith.constant 1 : index
    %c0_34 = arith.constant 0 : index
    %c0_35 = arith.constant 0 : index
    %61 = vector.load %arg4[%c1_33, %c0_34, %c0_35] : memref<2x8x256xf32, #tpu.memory_space<vmem>>, vector<1x8x256xf32>
    %62 = vector.shape_cast %61 : vector<1x8x256xf32> to vector<8x256xf32>
    %c1_36 = arith.constant 1 : index
    %c0_37 = arith.constant 0 : index
    %c0_38 = arith.constant 0 : index
    %63 = vector.load %arg2[%c1_36, %c0_37, %c0_38] : memref<2x26x256xbf16, #tpu.memory_space<vmem>>, vector<1x26x256xbf16>
    %64 = vector.shape_cast %63 : vector<1x26x256xbf16> to vector<26x256xbf16>
    %cst_39 = arith.constant dense<0.000000e+00> : vector<8x256xf32>
    %65 = tpu.matmul %1, %64, %cst_39 {dimension_numbers = #tpu.dot_dimension_numbers<[1], [0], [0], [1], [0, 0, 1, 1], [], []>} : vector<8x26xbf16>, vector<26x256xbf16>, vector<8x256xf32> -> vector<8x256xf32>
    %66 = vector.extract_strided_slice %62 {offsets = [0, 0], sizes = [1, 256], strides = [1, 1]} : vector<8x256xf32> to vector<1x256xf32>
    %67 = vector.broadcast %66 : vector<1x256xf32> to vector<8x256xf32>
    %68 = arith.addf %65, %67 : vector<8x256xf32>
    %cst_40 = arith.constant 0.000000e+00 : f32
    %69 = vector.broadcast %cst_40 : f32 to vector<8x256xf32>
    %70 = arith.maximumf %68, %69 : vector<8x256xf32>
    %c1_41 = arith.constant 1 : index
    %c0_42 = arith.constant 0 : index
    %c0_43 = arith.constant 0 : index
    %c0_44 = arith.constant 0 : index
    %71 = vector.load %arg3[%c1_41, %c0_42, %c0_43, %c0_44] : memref<2x4x256x256xbf16, #tpu.memory_space<vmem>>, vector<1x1x256x256xbf16>
    %72 = vector.shape_cast %71 : vector<1x1x256x256xbf16> to vector<256x256xbf16>
    %c1_45 = arith.constant 1 : index
    %c1_46 = arith.constant 1 : index
    %c0_47 = arith.constant 0 : index
    %c0_48 = arith.constant 0 : index
    %73 = vector.load %arg3[%c1_45, %c1_46, %c0_47, %c0_48] : memref<2x4x256x256xbf16, #tpu.memory_space<vmem>>, vector<1x1x256x256xbf16>
    %74 = vector.shape_cast %73 : vector<1x1x256x256xbf16> to vector<256x256xbf16>
    %75 = vector.extract_strided_slice %62 {offsets = [1, 0], sizes = [1, 256], strides = [1, 1]} : vector<8x256xf32> to vector<1x256xf32>
    %76 = vector.extract_strided_slice %62 {offsets = [2, 0], sizes = [1, 256], strides = [1, 1]} : vector<8x256xf32> to vector<1x256xf32>
    %77 = arith.truncf %70 : vector<8x256xf32> to vector<8x256xbf16>
    %cst_49 = arith.constant dense<0.000000e+00> : vector<8x256xf32>
    %78 = tpu.matmul %77, %72, %cst_49 {dimension_numbers = #tpu.dot_dimension_numbers<[1], [0], [0], [1], [0, 0, 1, 1], [], []>} : vector<8x256xbf16>, vector<256x256xbf16>, vector<8x256xf32> -> vector<8x256xf32>
    %79 = vector.broadcast %75 : vector<1x256xf32> to vector<8x256xf32>
    %80 = arith.addf %78, %79 : vector<8x256xf32>
    %cst_50 = arith.constant 0.000000e+00 : f32
    %81 = vector.broadcast %cst_50 : f32 to vector<8x256xf32>
    %82 = arith.maximumf %80, %81 : vector<8x256xf32>
    %83 = arith.truncf %82 : vector<8x256xf32> to vector<8x256xbf16>
    %cst_51 = arith.constant dense<0.000000e+00> : vector<8x256xf32>
    %84 = tpu.matmul %83, %74, %cst_51 {dimension_numbers = #tpu.dot_dimension_numbers<[1], [0], [0], [1], [0, 0, 1, 1], [], []>} : vector<8x256xbf16>, vector<256x256xbf16>, vector<8x256xf32> -> vector<8x256xf32>
    %85 = vector.broadcast %76 : vector<1x256xf32> to vector<8x256xf32>
    %86 = arith.addf %84, %85 : vector<8x256xf32>
    %87 = arith.addf %70, %86 : vector<8x256xf32>
    %cst_52 = arith.constant 0.000000e+00 : f32
    %88 = vector.broadcast %cst_52 : f32 to vector<8x256xf32>
    %89 = arith.maximumf %87, %88 : vector<8x256xf32>
    %c1_53 = arith.constant 1 : index
    %c2_54 = arith.constant 2 : index
    %c0_55 = arith.constant 0 : index
    %c0_56 = arith.constant 0 : index
    %90 = vector.load %arg3[%c1_53, %c2_54, %c0_55, %c0_56] : memref<2x4x256x256xbf16, #tpu.memory_space<vmem>>, vector<1x1x256x256xbf16>
    %91 = vector.shape_cast %90 : vector<1x1x256x256xbf16> to vector<256x256xbf16>
    %c1_57 = arith.constant 1 : index
    %c3_58 = arith.constant 3 : index
    %c0_59 = arith.constant 0 : index
    %c0_60 = arith.constant 0 : index
    %92 = vector.load %arg3[%c1_57, %c3_58, %c0_59, %c0_60] : memref<2x4x256x256xbf16, #tpu.memory_space<vmem>>, vector<1x1x256x256xbf16>
    %93 = vector.shape_cast %92 : vector<1x1x256x256xbf16> to vector<256x256xbf16>
    %94 = vector.extract_strided_slice %62 {offsets = [3, 0], sizes = [1, 256], strides = [1, 1]} : vector<8x256xf32> to vector<1x256xf32>
    %95 = vector.extract_strided_slice %62 {offsets = [4, 0], sizes = [1, 256], strides = [1, 1]} : vector<8x256xf32> to vector<1x256xf32>
    %96 = arith.truncf %89 : vector<8x256xf32> to vector<8x256xbf16>
    %cst_61 = arith.constant dense<0.000000e+00> : vector<8x256xf32>
    %97 = tpu.matmul %96, %91, %cst_61 {dimension_numbers = #tpu.dot_dimension_numbers<[1], [0], [0], [1], [0, 0, 1, 1], [], []>} : vector<8x256xbf16>, vector<256x256xbf16>, vector<8x256xf32> -> vector<8x256xf32>
    %98 = vector.broadcast %94 : vector<1x256xf32> to vector<8x256xf32>
    %99 = arith.addf %97, %98 : vector<8x256xf32>
    %cst_62 = arith.constant 0.000000e+00 : f32
    %100 = vector.broadcast %cst_62 : f32 to vector<8x256xf32>
    %101 = arith.maximumf %99, %100 : vector<8x256xf32>
    %102 = arith.truncf %101 : vector<8x256xf32> to vector<8x256xbf16>
    %cst_63 = arith.constant dense<0.000000e+00> : vector<8x256xf32>
    %103 = tpu.matmul %102, %93, %cst_63 {dimension_numbers = #tpu.dot_dimension_numbers<[1], [0], [0], [1], [0, 0, 1, 1], [], []>} : vector<8x256xbf16>, vector<256x256xbf16>, vector<8x256xf32> -> vector<8x256xf32>
    %104 = vector.broadcast %95 : vector<1x256xf32> to vector<8x256xf32>
    %105 = arith.addf %103, %104 : vector<8x256xf32>
    %106 = arith.addf %89, %105 : vector<8x256xf32>
    %cst_64 = arith.constant 0.000000e+00 : f32
    %107 = vector.broadcast %cst_64 : f32 to vector<8x256xf32>
    %108 = arith.maximumf %106, %107 : vector<8x256xf32>
    %109 = vector.extract_strided_slice %62 {offsets = [5, 0], sizes = [1, 256], strides = [1, 1]} : vector<8x256xf32> to vector<1x256xf32>
    %110 = vector.broadcast %109 : vector<1x256xf32> to vector<8x256xf32>
    %111 = arith.mulf %108, %110 : vector<8x256xf32>
    %cst_65 = arith.constant dense<0.000000e+00> : vector<8xf32>
    %112 = vector.multi_reduction <add>, %111, %cst_65 [1] : vector<8x256xf32> to vector<8xf32>
    %113 = vector.shape_cast %112 : vector<8xf32> to vector<8x1xf32>
    %114 = vector.extract_strided_slice %62 {offsets = [6, 0], sizes = [1, 1], strides = [1, 1]} : vector<8x256xf32> to vector<1x1xf32>
    %115 = vector.broadcast %114 : vector<1x1xf32> to vector<8x1xf32>
    %116 = arith.addf %113, %115 : vector<8x1xf32>
    %c1_66 = arith.constant 1 : index
    %c0_67 = arith.constant 0 : index
    %c0_68 = arith.constant 0 : index
    %117 = vector.load %arg5[%c1_66, %c0_67, %c0_68] : memref<2x8x1xf32, #tpu.memory_space<vmem>>, vector<1x8x1xf32>
    %118 = vector.shape_cast %117 : vector<1x8x1xf32> to vector<8x1xf32>
    %119 = vector.shape_cast %116 : vector<8x1xf32> to vector<1x8x1xf32>
    tpu.vector_store %arg5[%c1_66, %c0_67, %c0_68], %119 {strides = array<i32>} : memref<2x8x1xf32, #tpu.memory_space<vmem>>, vector<1x8x1xf32>,
    return
  }
  func.func @transform_0(%arg0: i32) -> (i32, i32) {
    %c0_i32 = arith.constant 0 : i32
    %c0_i32_0 = arith.constant 0 : i32
    return %arg0, %c0_i32 : i32, i32
  }
  func.func @transform_1(%arg0: i32) -> (i32, i32, i32) {
    %c0_i32 = arith.constant 0 : i32
    %c0_i32_0 = arith.constant 0 : i32
    %c0_i32_1 = arith.constant 0 : i32
    %c0_i32_2 = arith.constant 0 : i32
    return %c0_i32, %c0_i32_0, %c0_i32_1 : i32, i32, i32
  }
  func.func @transform_2(%arg0: i32) -> (i32, i32, i32, i32) {
    %c0_i32 = arith.constant 0 : i32
    %c0_i32_0 = arith.constant 0 : i32
    %c0_i32_1 = arith.constant 0 : i32
    %c0_i32_2 = arith.constant 0 : i32
    %c0_i32_3 = arith.constant 0 : i32
    return %c0_i32, %c0_i32_0, %c0_i32_1, %c0_i32_2 : i32, i32, i32, i32
  }
  func.func @transform_3(%arg0: i32) -> (i32, i32, i32) {
    %c0_i32 = arith.constant 0 : i32
    %c0_i32_0 = arith.constant 0 : i32
    %c0_i32_1 = arith.constant 0 : i32
    %c0_i32_2 = arith.constant 0 : i32
    return %c0_i32, %c0_i32_0, %c0_i32_1 : i32, i32, i32
  }
  func.func @transform_4(%arg0: i32) -> (i32, i32, i32) {
    %c0_i32 = arith.constant 0 : i32
    %c0_i32_0 = arith.constant 0 : i32
    %c0_i32_1 = arith.constant 0 : i32
    return %c0_i32, %arg0, %c0_i32_0 : i32, i32, i32
  }
}

</mosaic_0001>

<llo_original>
// kernel: tpu_custom_call.1
$region0: #{tpu_custom_call.1}
  #allocation0 [shape = 'u32[]', space=smem, size = 0x4, offset = 0x4, fixed_abs, tag = 'smem constant byte address 0x4 - core index']
  #allocation1 [shape = 'u32[144,128]{1,0:T(1,128)}', space=vmem, size = 0x12000, scoped, tag = 'internal scratch']
  %s0 = inlined_call_operand.vmem [shape: f32[8,26], index: 0, kind: input, shape index: {}]
  %s1 = inlined_call_operand.vmem [shape: bf16[2,26,256], index: 1, kind: input, shape index: {}]
  %s2 = inlined_call_operand.hbm [shape: bf16[2,4,256,256], index: 2, kind: input, shape index: {}]
  %s3 = inlined_call_operand.vmem [shape: f32[2,8,256], index: 3, kind: input, shape index: {}]
  %s4 = inlined_call_operand.vmem [shape: f32[2,8,1], index: 4, kind: output, shape index: {}]
  %s5 = sld [smem:[#allocation0]]
  $region30: #{tpu_custom_call.1} parent=0
    _
  %s7 = ssub.s32 1, %s5
  %s8 = scalar_select 0, %s7, %s5
  $region1: #{tpu_custom_call.1} parent=0
    #allocation2 [shape = 'u8[1048576]{0}', space=vmem, size = 0x100000, scoped, tag = 'input window, operand 2, single buffered']
    #allocation3 [shape = 's32[1]{0}', space=sflag, size = 0x4, scoped, tag = 'scoped memory for tpu_custom_call.1']
    %9 = vsyncpa [#allocation3], 0
    // Predicated region
    $region2: #{tpu_custom_call.1} parent=1 // pred_check
      _
    $region3: #{tpu_custom_call.1} parent=1 // pred_check_branch
      %11 = sbr.rel (0) target = $region5
    $region4: #{tpu_custom_call.1} parent=1 // pred_region
      _
    $region5: #{tpu_custom_call.1} parent=1 // pred_fallthru
      _
    // Predicated region
    $region6: #{tpu_custom_call.1} parent=1 // pred_check
      _
    $region7: #{tpu_custom_call.1} parent=1 // pred_check_branch
      %13 = sbr.rel (0) target = $region9
    $region8: #{tpu_custom_call.1} parent=1 // pred_region
      _
    $region9: #{tpu_custom_call.1} parent=1 // pred_fallthru
      _
    // Predicated region
    $region10: #{tpu_custom_call.1} parent=1 // pred_check
      _
    $region11: #{tpu_custom_call.1} parent=1 // pred_check_branch
      %15 = sbr.rel (0) target = $region13
    $region12: #{tpu_custom_call.1} parent=1 // pred_region
      %s17 = ssub.s32 32768, 32768
      %18 = vsyncadd [#allocation3], %s17
      %s19 = sshll.u32 [#allocation2], 4
      %s20 = int_to_ptr.vmem [resolvable:$true] %s19
      %25 = dma.hbm_to_vmem [thread:$0]  %s2, 32768, %s20, [#allocation3], 128, 128, 8
    $region13: #{tpu_custom_call.1} parent=1 // pred_fallthru
      _
    // Predicated region
    $region14: #{tpu_custom_call.1} parent=1 // pred_check
      _
    $region15: #{tpu_custom_call.1} parent=1 // pred_check_branch
      %27 = sbr.rel (0) target = $region17
    $region16: #{tpu_custom_call.1} parent=1 // pred_region
      _
    $region17: #{tpu_custom_call.1} parent=1 // pred_fallthru
      _
    // Predicated region
    $region18: #{tpu_custom_call.1} parent=1 // pred_check
      _
    $region19: #{tpu_custom_call.1} parent=1 // pred_check_branch
      %29 = sbr.rel (0) target = $region21
    $region20: #{tpu_custom_call.1} parent=1 // pred_region
      %30 = dma.done [#allocation3], 32768
    $region21: #{tpu_custom_call.1} parent=1 // pred_fallthru
      _
    %v32 = vld [vmem:[%s0] sm:$0xff]
    %v33 = vpack.c.bf16 %v32, %v32
    %v34 = vld [vmem:[%s3] sm:$0xff]
    %v35 = vld [vmem:[%s3 + $0x8] sm:$0xff]
    %v36 = vld [vmem:[%s1] sm:$0xff]
    %v37 = vld [vmem:[%s1 + $0x8] sm:$0xff]
    %v38 = vld [vmem:[%s1 + $0x10] sm:$0xff]
    %v39 = vld [vmem:[%s1 + $0x18] sm:$0x11]
    %v40 = vlaneseq
    %v41 = vshrl.u32 %v40, 7
    %v42 = vsub.s32 0, %v41
    %v43 = vrot.slane %v34, %v42
    %v44 = vlaneseq
    %v45 = vshrl.u32 %v44, 7
    %v46 = vsub.s32 0, %v45
    %v47 = vrot.slane %v35, %v46
    %v52 = vunpack.c.l.b16 %v36
    %v53 = vunpack.c.h.b16 %v36
    %v54 = vunpack.c.l.b16 %v37
    %v55 = vunpack.c.h.b16 %v37
    %v56 = vunpack.c.l.b16 %v38
    %v57 = vunpack.c.h.b16 %v38
    %v58 = vunpack.c.l.b16 %v39
    %v59 = vunpack.c.h.b16 %v39
    %v60 = vpack.c.b16 %v54, %v52
    %v61 = vpack.c.b16 %v55, %v53
    %v62 = vpack.c.b16 %v58, %v56
    %v63 = vpack.c.b16 %v59, %v57
    %vm66 = vcmask 211968
    %v68 = vsel %vm66, %v33, 0
    %vm70 = vcmask 1044480
    %v72 = vsel %vm70, %v62, 0
    %v75 = vsel %vm70, %v63, 0
    %77 = vmatprep.subr.bf16.mxu0 0
    %78 = vmatpush1.bf16.msra.mxu0 0
    %79 = vmatprep.subr.bf16.mxu0 0
    %80 = vmatpush1.bf16.msra.mxu0 0
    %81 = vmatprep.subr.bf16.mxu0 0
    %82 = vmatpush1.bf16.msra.mxu0 0
    %83 = vmatprep.subr.bf16.mxu0 0
    %84 = vmatpush1.bf16.msra.mxu0 0
    %85 = vmatprep.subr.bf16.mxu0 0
    %86 = vmatpush1.bf16.msra.mxu0 0
    %87 = vmatprep.subr.bf16.mxu0 0
    %88 = vmatpush1.bf16.msra.mxu0 0
    %89 = vmatprep.subr.bf16.mxu0 %v75
    %90 = vmatpush1.bf16.msra.mxu0 %v72
    %91 = vmatprep.subr.bf16.mxu0 %v61
    %92 = vmatpush1.bf16.msra.mxu0 %v60
    %93 = vmatprep.subr.bf16.mxu0 0
    %94 = vmatpush2.bf16.msra.mxu0 0
    %95 = vmatprep.subr.bf16.mxu0 0
    %96 = vmatpush2.bf16.msra.mxu0 0
    %97 = vmatprep.subr.bf16.mxu0 0
    %98 = vmatpush2.bf16.msra.mxu0 0
    %99 = vmatprep.subr.bf16.mxu0 0
    %100 = vmatpush2.bf16.msra.mxu0 0
    %101 = vmatprep.subr.bf16.mxu0 0
    %102 = vmatpush2.bf16.msra.mxu0 0
    %103 = vmatprep.subr.bf16.mxu0 0
    %104 = vmatpush2.bf16.msra.mxu0 0
    %105 = vmatprep.subr.bf16.mxu0 0
    %106 = vmatpush2.bf16.msra.mxu0 0
    %107 = vmatprep.subr.bf16.mxu0 0
    %108 = vmatpush2.bf16.msra.mxu0 0
    %109 = vmatprep.mubr.bf16.mxu0 0
    %110 = vmatmul.mubr.bf16.gmra.mxu0 %v68
    %v111 = vpop.f32.mrf.mxu0
    %v112 = vadd.f32 %v43, %v111
    %v113 = vpop.f32.mrf.mxu0
    %v114 = vadd.f32 %v47, %v113
    %v115 = vpop.f32.mrf.mxu0
    %v116 = vpop.f32.mrf.mxu0
    %117 = vdwg.mxu0
    %v118 = vmax.f32 %v112, 0.0
    %v119 = vmax.f32 %v114, 0.0
    %v120 = vld [vmem:[#allocation2] sm:$0xff]
    %v121 = vld [vmem:[#allocation2 + $0x8] sm:$0xff]
    %v122 = vld [vmem:[#allocation2 + $0x10] sm:$0xff]
    %v123 = vld [vmem:[#allocation2 + $0x18] sm:$0xff]
    %v124 = vld [vmem:[#allocation2 + $0x20] sm:$0xff]
    %v125 = vld [vmem:[#allocation2 + $0x28] sm:$0xff]
    %v126 = vld [vmem:[#allocation2 + $0x30] sm:$0xff]
    %v127 = vld [vmem:[#allocation2 + $0x38] sm:$0xff]
    %v128 = vld [vmem:[#allocation2 + $0x40] sm:$0xff]
    %v129 = vld [vmem:[#allocation2 + $0x48] sm:$0xff]
    %v130 = vld [vmem:[#allocation2 + $0x50] sm:$0xff]
    %v131 = vld [vmem:[#allocation2 + $0x58] sm:$0xff]
    %v132 = vld [vmem:[#allocation2 + $0x60] sm:$0xff]
    %v133 = vld [vmem:[#allocation2 + $0x68] sm:$0xff]
    %v134 = vld [vmem:[#allocation2 + $0x70] sm:$0xff]
    %v135 = vld [vmem:[#allocation2 + $0x78] sm:$0xff]
    %v136 = vld [vmem:[#allocation2 + $0x80] sm:$0xff]
    %v137 = vld [vmem:[#allocation2 + $0x88] sm:$0xff]
    %v138 = vld [vmem:[#allocation2 + $0x90] sm:$0xff]
    %v139 = vld [vmem:[#allocation2 + $0x98] sm:$0xff]
    %v140 = vld [vmem:[#allocation2 + $0xa0] sm:$0xff]
    %v141 = vld [vmem:[#allocation2 + $0xa8] sm:$0xff]
    %v142 = vld [vmem:[#allocation2 + $0xb0] sm:$0xff]
    %v143 = vld [vmem:[#allocation2 + $0xb8] sm:$0xff]
    %v144 = vld [vmem:[#allocation2 + $0xc0] sm:$0xff]
    %v145 = vld [vmem:[#allocation2 + $0xc8] sm:$0xff]
    %v146 = vld [vmem:[#allocation2 + $0xd0] sm:$0xff]
    %v147 = vld [vmem:[#allocation2 + $0xd8] sm:$0xff]
    %v148 = vld [vmem:[#allocation2 + $0xe0] sm:$0xff]
    %v149 = vld [vmem:[#allocation2 + $0xe8] sm:$0xff]
    %v150 = vld [vmem:[#allocation2 + $0xf0] sm:$0xff]
    %v151 = vld [vmem:[#allocation2 + $0xf8] sm:$0xff]
    %s152 = scalar_lea.vmem [#allocation2], 256
    %v153 = vld [vmem:[%s152] sm:$0xff]
    %v154 = vld [vmem:[%s152 + $0x8] sm:$0xff]
    %v155 = vld [vmem:[%s152 + $0x10] sm:$0xff]
    %v156 = vld [vmem:[%s152 + $0x18] sm:$0xff]
    %v157 = vld [vmem:[%s152 + $0x20] sm:$0xff]
    %v158 = vld [vmem:[%s152 + $0x28] sm:$0xff]
    %v159 = vld [vmem:[%s152 + $0x30] sm:$0xff]
    %v160 = vld [vmem:[%s152 + $0x38] sm:$0xff]
    %v161 = vld [vmem:[%s152 + $0x40] sm:$0xff]
    %v162 = vld [vmem:[%s152 + $0x48] sm:$0xff]
    %v163 = vld [vmem:[%s152 + $0x50] sm:$0xff]
    %v164 = vld [vmem:[%s152 + $0x58] sm:$0xff]
    %v165 = vld [vmem:[%s152 + $0x60] sm:$0xff]
    %v166 = vld [vmem:[%s152 + $0x68] sm:$0xff]
    %v167 = vld [vmem:[%s152 + $0x70] sm:$0xff]
    %v168 = vld [vmem:[%s152 + $0x78] sm:$0xff]
    %v169 = vld [vmem:[%s152 + $0x80] sm:$0xff]
    %v170 = vld [vmem:[%s152 + $0x88] sm:$0xff]
    %v171 = vld [vmem:[%s152 + $0x90] sm:$0xff]
    %v172 = vld [vmem:[%s152 + $0x98] sm:$0xff]
    %v173 = vld [vmem:[%s152 + $0xa0] sm:$0xff]
    %v174 = vld [vmem:[%s152 + $0xa8] sm:$0xff]
    %v175 = vld [vmem:[%s152 + $0xb0] sm:$0xff]
    %v176 = vld [vmem:[%s152 + $0xb8] sm:$0xff]
    %v177 = vld [vmem:[%s152 + $0xc0] sm:$0xff]
    %v178 = vld [vmem:[%s152 + $0xc8] sm:$0xff]
    %v179 = vld [vmem:[%s152 + $0xd0] sm:$0xff]
    %v180 = vld [vmem:[%s152 + $0xd8] sm:$0xff]
    %v181 = vld [vmem:[%s152 + $0xe0] sm:$0xff]
    %v182 = vld [vmem:[%s152 + $0xe8] sm:$0xff]
    %v183 = vld [vmem:[%s152 + $0xf0] sm:$0xff]
    %v184 = vld [vmem:[%s152 + $0xf8] sm:$0xff]
    %v185 = vpack.c.bf16 %v118, %v118
    %v186 = vpack.c.bf16 %v119, %v119
    %v187 = vlaneseq
    %v188 = vshrl.u32 %v187, 7
    %v189 = vsub.s32 1, %v188
    %v190 = vrot.slane %v34, %v189
    %v191 = vlaneseq
    %v192 = vshrl.u32 %v191, 7
    %v193 = vsub.s32 1, %v192
    %v194 = vrot.slane %v35, %v193
    %v227 = vunpack.c.l.b16 %v120
    %v228 = vunpack.c.h.b16 %v120
    %v229 = vunpack.c.l.b16 %v121
    %v230 = vunpack.c.h.b16 %v121
    %v231 = vunpack.c.l.b16 %v122
    %v232 = vunpack.c.h.b16 %v122
    %v233 = vunpack.c.l.b16 %v123
    %v234 = vunpack.c.h.b16 %v123
    %v235 = vunpack.c.l.b16 %v124
    %v236 = vunpack.c.h.b16 %v124
    %v237 = vunpack.c.l.b16 %v125
    %v238 = vunpack.c.h.b16 %v125
    %v239 = vunpack.c.l.b16 %v126
    %v240 = vunpack.c.h.b16 %v126
    %v241 = vunpack.c.l.b16 %v127
    %v242 = vunpack.c.h.b16 %v127
    %v243 = vunpack.c.l.b16 %v128
    %v244 = vunpack.c.h.b16 %v128
    %v245 = vunpack.c.l.b16 %v129
    %v246 = vunpack.c.h.b16 %v129
    %v247 = vunpack.c.l.b16 %v130
    %v248 = vunpack.c.h.b16 %v130
    %v249 = vunpack.c.l.b16 %v131
    %v250 = vunpack.c.h.b16 %v131
    %v251 = vunpack.c.l.b16 %v132
    %v252 = vunpack.c.h.b16 %v132
    %v253 = vunpack.c.l.b16 %v133
    %v254 = vunpack.c.h.b16 %v133
    %v255 = vunpack.c.l.b16 %v134
    %v256 = vunpack.c.h.b16 %v134
    %v257 = vunpack.c.l.b16 %v135
    %v258 = vunpack.c.h.b16 %v135
    %v259 = vunpack.c.l.b16 %v136
    %v260 = vunpack.c.h.b16 %v136
    %v261 = vunpack.c.l.b16 %v137
    %v262 = vunpack.c.h.b16 %v137
    %v263 = vunpack.c.l.b16 %v138
    %v264 = vunpack.c.h.b16 %v138
    %v265 = vunpack.c.l.b16 %v139
    %v266 = vunpack.c.h.b16 %v139
    %v267 = vunpack.c.l.b16 %v140
    %v268 = vunpack.c.h.b16 %v140
    %v269 = vunpack.c.l.b16 %v141
    %v270 = vunpack.c.h.b16 %v141
    %v271 = vunpack.c.l.b16 %v142
    %v272 = vunpack.c.h.b16 %v142
    %v273 = vunpack.c.l.b16 %v143
    %v274 = vunpack.c.h.b16 %v143
    %v275 = vunpack.c.l.b16 %v144
    %v276 = vunpack.c.h.b16 %v144
    %v277 = vunpack.c.l.b16 %v145
    %v278 = vunpack.c.h.b16 %v145
    %v279 = vunpack.c.l.b16 %v146
    %v280 = vunpack.c.h.b16 %v146
    %v281 = vunpack.c.l.b16 %v147
    %v282 = vunpack.c.h.b16 %v147
    %v283 = vunpack.c.l.b16 %v148
    %v284 = vunpack.c.h.b16 %v148
    %v285 = vunpack.c.l.b16 %v149
    %v286 = vunpack.c.h.b16 %v149
    %v287 = vunpack.c.l.b16 %v150
    %v288 = vunpack.c.h.b16 %v150
    %v289 = vunpack.c.l.b16 %v151
    %v290 = vunpack.c.h.b16 %v151
    %v291 = vpack.c.b16 %v229, %v227
    %v292 = vpack.c.b16 %v230, %v228
    %v293 = vpack.c.b16 %v233, %v231
    %v294 = vpack.c.b16 %v234, %v232
    %v295 = vpack.c.b16 %v237, %v235
    %v296 = vpack.c.b16 %v238, %v236
    %v297 = vpack.c.b16 %v241, %v239
    %v298 = vpack.c.b16 %v242, %v240
    %v299 = vpack.c.b16 %v245, %v243
    %v300 = vpack.c.b16 %v246, %v244
    %v301 = vpack.c.b16 %v249, %v247
    %v302 = vpack.c.b16 %v250, %v248
    %v303 = vpack.c.b16 %v253, %v251
    %v304 = vpack.c.b16 %v254, %v252
    %v305 = vpack.c.b16 %v257, %v255
    %v306 = vpack.c.b16 %v258, %v256
    %v307 = vpack.c.b16 %v261, %v259
    %v308 = vpack.c.b16 %v262, %v260
    %v309 = vpack.c.b16 %v265, %v263
    %v310 = vpack.c.b16 %v266, %v264
    %v311 = vpack.c.b16 %v269, %v267
    %v312 = vpack.c.b16 %v270, %v268
    %v313 = vpack.c.b16 %v273, %v271
    %v314 = vpack.c.b16 %v274, %v272
    %v315 = vpack.c.b16 %v277, %v275
    %v316 = vpack.c.b16 %v278, %v276
    %v317 = vpack.c.b16 %v281, %v279
    %v318 = vpack.c.b16 %v282, %v280
    %v319 = vpack.c.b16 %v285, %v283
    %v320 = vpack.c.b16 %v286, %v284
    %v321 = vpack.c.b16 %v289, %v287
    %v322 = vpack.c.b16 %v290, %v288
    %355 = vmatprep.subr.bf16.mxu0 %v306
    %356 = vmatpush1.bf16.msra.mxu0 %v305
    %357 = vmatprep.subr.bf16.mxu0 %v304
    %358 = vmatpush1.bf16.msra.mxu0 %v303
    %359 = vmatprep.subr.bf16.mxu0 %v302
    %360 = vmatpush1.bf16.msra.mxu0 %v301
    %361 = vmatprep.subr.bf16.mxu0 %v300
    %362 = vmatpush1.bf16.msra.mxu0 %v299
    %363 = vmatprep.subr.bf16.mxu0 %v298
    %364 = vmatpush1.bf16.msra.mxu0 %v297
    %365 = vmatprep.subr.bf16.mxu0 %v296
    %366 = vmatpush1.bf16.msra.mxu0 %v295
    %367 = vmatprep.subr.bf16.mxu0 %v294
    %368 = vmatpush1.bf16.msra.mxu0 %v293
    %369 = vmatprep.subr.bf16.mxu0 %v292
    %370 = vmatpush1.bf16.msra.mxu0 %v291
    %371 = vmatprep.subr.bf16.mxu0 %v322
    %372 = vmatpush2.bf16.msra.mxu0 %v321
    %373 = vmatprep.subr.bf16.mxu0 %v320
    %374 = vmatpush2.bf16.msra.mxu0 %v319
    %375 = vmatprep.subr.bf16.mxu0 %v318
    %376 = vmatpush2.bf16.msra.mxu0 %v317
    %377 = vmatprep.subr.bf16.mxu0 %v316
    %378 = vmatpush2.bf16.msra.mxu0 %v315
    %379 = vmatprep.subr.bf16.mxu0 %v314
    %380 = vmatpush2.bf16.msra.mxu0 %v313
    %381 = vmatprep.subr.bf16.mxu0 %v312
    %382 = vmatpush2.bf16.msra.mxu0 %v311
    %383 = vmatprep.subr.bf16.mxu0 %v310
    %384 = vmatpush2.bf16.msra.mxu0 %v309
    %385 = vmatprep.subr.bf16.mxu0 %v308
    %386 = vmatpush2.bf16.msra.mxu0 %v307
    %387 = vmatprep.mubr.bf16.mxu0 %v186
    %388 = vmatmul.mubr.bf16.gmra.mxu0 %v185
    %v389 = vpop.f32.mrf.mxu0
    %v390 = vadd.f32 %v190, %v389
    %v391 = vpop.f32.mrf.mxu0
    %v392 = vadd.f32 %v194, %v391
    %v393 = vpop.f32.mrf.mxu0
    %v394 = vpop.f32.mrf.mxu0
    %395 = vdwg.mxu0
    %v396 = vmax.f32 %v390, 0.0
    %v397 = vmax.f32 %v392, 0.0
    %v398 = vpack.c.bf16 %v396, %v396
    %v399 = vpack.c.bf16 %v397, %v397
    %v400 = vlaneseq
    %v401 = vshrl.u32 %v400, 7
    %v402 = vsub.s32 2, %v401
    %v403 = vrot.slane %v34, %v402
    %v404 = vlaneseq
    %v405 = vshrl.u32 %v404, 7
    %v406 = vsub.s32 2, %v405
    %v407 = vrot.slane %v35, %v406
    %v440 = vunpack.c.l.b16 %v153
    %v441 = vunpack.c.h.b16 %v153
    %v442 = vunpack.c.l.b16 %v154
    %v443 = vunpack.c.h.b16 %v154
    %v444 = vunpack.c.l.b16 %v155
    %v445 = vunpack.c.h.b16 %v155
    %v446 = vunpack.c.l.b16 %v156
    %v447 = vunpack.c.h.b16 %v156
    %v448 = vunpack.c.l.b16 %v157
    %v449 = vunpack.c.h.b16 %v157
    %v450 = vunpack.c.l.b16 %v158
    %v451 = vunpack.c.h.b16 %v158
    %v452 = vunpack.c.l.b16 %v159
    %v453 = vunpack.c.h.b16 %v159
    %v454 = vunpack.c.l.b16 %v160
    %v455 = vunpack.c.h.b16 %v160
    %v456 = vunpack.c.l.b16 %v161
    %v457 = vunpack.c.h.b16 %v161
    %v458 = vunpack.c.l.b16 %v162
    %v459 = vunpack.c.h.b16 %v162
    %v460 = vunpack.c.l.b16 %v163
    %v461 = vunpack.c.h.b16 %v163
    %v462 = vunpack.c.l.b16 %v164
    %v463 = vunpack.c.h.b16 %v164
    %v464 = vunpack.c.l.b16 %v165
    %v465 = vunpack.c.h.b16 %v165
    %v466 = vunpack.c.l.b16 %v166
    %v467 = vunpack.c.h.b16 %v166
    %v468 = vunpack.c.l.b16 %v167
    %v469 = vunpack.c.h.b16 %v167
    %v470 = vunpack.c.l.b16 %v168
    %v471 = vunpack.c.h.b16 %v168
    %v472 = vunpack.c.l.b16 %v169
    %v473 = vunpack.c.h.b16 %v169
    %v474 = vunpack.c.l.b16 %v170
    %v475 = vunpack.c.h.b16 %v170
    %v476 = vunpack.c.l.b16 %v171
    %v477 = vunpack.c.h.b16 %v171
    %v478 = vunpack.c.l.b16 %v172
    %v479 = vunpack.c.h.b16 %v172
    %v480 = vunpack.c.l.b16 %v173
    %v481 = vunpack.c.h.b16 %v173
    %v482 = vunpack.c.l.b16 %v174
    %v483 = vunpack.c.h.b16 %v174
    %v484 = vunpack.c.l.b16 %v175
    %v485 = vunpack.c.h.b16 %v175
    %v486 = vunpack.c.l.b16 %v176
    %v487 = vunpack.c.h.b16 %v176
    %v488 = vunpack.c.l.b16 %v177
    %v489 = vunpack.c.h.b16 %v177
    %v490 = vunpack.c.l.b16 %v178
    %v491 = vunpack.c.h.b16 %v178
    %v492 = vunpack.c.l.b16 %v179
    %v493 = vunpack.c.h.b16 %v179
    %v494 = vunpack.c.l.b16 %v180
    %v495 = vunpack.c.h.b16 %v180
    %v496 = vunpack.c.l.b16 %v181
    %v497 = vunpack.c.h.b16 %v181
    %v498 = vunpack.c.l.b16 %v182
    %v499 = vunpack.c.h.b16 %v182
    %v500 = vunpack.c.l.b16 %v183
    %v501 = vunpack.c.h.b16 %v183
    %v502 = vunpack.c.l.b16 %v184
    %v503 = vunpack.c.h.b16 %v184
    %v504 = vpack.c.b16 %v442, %v440
    %v505 = vpack.c.b16 %v443, %v441
    %v506 = vpack.c.b16 %v446, %v444
    %v507 = vpack.c.b16 %v447, %v445
    %v508 = vpack.c.b16 %v450, %v448
    %v509 = vpack.c.b16 %v451, %v449
    %v510 = vpack.c.b16 %v454, %v452
    %v511 = vpack.c.b16 %v455, %v453
    %v512 = vpack.c.b16 %v458, %v456
    %v513 = vpack.c.b16 %v459, %v457
    %v514 = vpack.c.b16 %v462, %v460
    %v515 = vpack.c.b16 %v463, %v461
    %v516 = vpack.c.b16 %v466, %v464
    %v517 = vpack.c.b16 %v467, %v465
    %v518 = vpack.c.b16 %v470, %v468
    %v519 = vpack.c.b16 %v471, %v469
    %v520 = vpack.c.b16 %v474, %v472
    %v521 = vpack.c.b16 %v475, %v473
    %v522 = vpack.c.b16 %v478, %v476
    %v523 = vpack.c.b16 %v479, %v477
    %v524 = vpack.c.b16 %v482, %v480
    %v525 = vpack.c.b16 %v483, %v481
    %v526 = vpack.c.b16 %v486, %v484
    %v527 = vpack.c.b16 %v487, %v485
    %v528 = vpack.c.b16 %v490, %v488
    %v529 = vpack.c.b16 %v491, %v489
    %v530 = vpack.c.b16 %v494, %v492
    %v531 = vpack.c.b16 %v495, %v493
    %v532 = vpack.c.b16 %v498, %v496
    %v533 = vpack.c.b16 %v499, %v497
    %v534 = vpack.c.b16 %v502, %v500
    %v535 = vpack.c.b16 %v503, %v501
    %568 = vmatprep.subr.bf16.mxu0 %v519
    %569 = vmatpush1.bf16.msra.mxu0 %v518
    %570 = vmatprep.subr.bf16.mxu0 %v517
    %571 = vmatpush1.bf16.msra.mxu0 %v516
    %572 = vmatprep.subr.bf16.mxu0 %v515
    %573 = vmatpush1.bf16.msra.mxu0 %v514
    %574 = vmatprep.subr.bf16.mxu0 %v513
    %575 = vmatpush1.bf16.msra.mxu0 %v512
    %576 = vmatprep.subr.bf16.mxu0 %v511
    %577 = vmatpush1.bf16.msra.mxu0 %v510
    %578 = vmatprep.subr.bf16.mxu0 %v509
    %579 = vmatpush1.bf16.msra.mxu0 %v508
    %580 = vmatprep.subr.bf16.mxu0 %v507
    %581 = vmatpush1.bf16.msra.mxu0 %v506
    %582 = vmatprep.subr.bf16.mxu0 %v505
    %583 = vmatpush1.bf16.msra.mxu0 %v504
    %584 = vmatprep.subr.bf16.mxu0 %v535
    %585 = vmatpush2.bf16.msra.mxu0 %v534
    %586 = vmatprep.subr.bf16.mxu0 %v533
    %587 = vmatpush2.bf16.msra.mxu0 %v532
    %588 = vmatprep.subr.bf16.mxu0 %v531
    %589 = vmatpush2.bf16.msra.mxu0 %v530
    %590 = vmatprep.subr.bf16.mxu0 %v529
    %591 = vmatpush2.bf16.msra.mxu0 %v528
    %592 = vmatprep.subr.bf16.mxu0 %v527
    %593 = vmatpush2.bf16.msra.mxu0 %v526
    %594 = vmatprep.subr.bf16.mxu0 %v525
    %595 = vmatpush2.bf16.msra.mxu0 %v524
    %596 = vmatprep.subr.bf16.mxu0 %v523
    %597 = vmatpush2.bf16.msra.mxu0 %v522
    %598 = vmatprep.subr.bf16.mxu0 %v521
    %599 = vmatpush2.bf16.msra.mxu0 %v520
    %600 = vmatprep.mubr.bf16.mxu0 %v399
    %601 = vmatmul.mubr.bf16.gmra.mxu0 %v398
    %v602 = vpop.f32.mrf.mxu0
    %v603 = vadd.f32 %v403, %v602
    %v604 = vpop.f32.mrf.mxu0
    %v605 = vadd.f32 %v407, %v604
    %v606 = vpop.f32.mrf.mxu0
    %v607 = vpop.f32.mrf.mxu0
    %608 = vdwg.mxu0
    %v609 = vadd.f32 %v118, %v603
    %v610 = vadd.f32 %v119, %v605
    %v611 = vmax.f32 %v609, 0.0
    %v612 = vmax.f32 %v610, 0.0
    %s613 = scalar_lea.vmem [#allocation2], 512
    %v614 = vld [vmem:[%s613] sm:$0xff]
    %v615 = vld [vmem:[%s613 + $0x8] sm:$0xff]
    %v616 = vld [vmem:[%s613 + $0x10] sm:$0xff]
    %v617 = vld [vmem:[%s613 + $0x18] sm:$0xff]
    %v618 = vld [vmem:[%s613 + $0x20] sm:$0xff]
    %v619 = vld [vmem:[%s613 + $0x28] sm:$0xff]
    %v620 = vld [vmem:[%s613 + $0x30] sm:$0xff]
    %v621 = vld [vmem:[%s613 + $0x38] sm:$0xff]
    %v622 = vld [vmem:[%s613 + $0x40] sm:$0xff]
    %v623 = vld [vmem:[%s613 + $0x48] sm:$0xff]
    %v624 = vld [vmem:[%s613 + $0x50] sm:$0xff]
    %v625 = vld [vmem:[%s613 + $0x58] sm:$0xff]
    %v626 = vld [vmem:[%s613 + $0x60] sm:$0xff]
    %v627 = vld [vmem:[%s613 + $0x68] sm:$0xff]
    %v628 = vld [vmem:[%s613 + $0x70] sm:$0xff]
    %v629 = vld [vmem:[%s613 + $0x78] sm:$0xff]
    %v630 = vld [vmem:[%s613 + $0x80] sm:$0xff]
    %v631 = vld [vmem:[%s613 + $0x88] sm:$0xff]
    %v632 = vld [vmem:[%s613 + $0x90] sm:$0xff]
    %v633 = vld [vmem:[%s613 + $0x98] sm:$0xff]
    %v634 = vld [vmem:[%s613 + $0xa0] sm:$0xff]
    %v635 = vld [vmem:[%s613 + $0xa8] sm:$0xff]
    %v636 = vld [vmem:[%s613 + $0xb0] sm:$0xff]
    %v637 = vld [vmem:[%s613 + $0xb8] sm:$0xff]
    %v638 = vld [vmem:[%s613 + $0xc0] sm:$0xff]
    %v639 = vld [vmem:[%s613 + $0xc8] sm:$0xff]
    %v640 = vld [vmem:[%s613 + $0xd0] sm:$0xff]
    %v641 = vld [vmem:[%s613 + $0xd8] sm:$0xff]
    %v642 = vld [vmem:[%s613 + $0xe0] sm:$0xff]
    %v643 = vld [vmem:[%s613 + $0xe8] sm:$0xff]
    %v644 = vld [vmem:[%s613 + $0xf0] sm:$0xff]
    %v645 = vld [vmem:[%s613 + $0xf8] sm:$0xff]
    %s646 = scalar_lea.vmem [#allocation2], 768
    %v647 = vld [vmem:[%s646] sm:$0xff]
    %v648 = vld [vmem:[%s646 + $0x8] sm:$0xff]
    %v649 = vld [vmem:[%s646 + $0x10] sm:$0xff]
    %v650 = vld [vmem:[%s646 + $0x18] sm:$0xff]
    %v651 = vld [vmem:[%s646 + $0x20] sm:$0xff]
    %v652 = vld [vmem:[%s646 + $0x28] sm:$0xff]
    %v653 = vld [vmem:[%s646 + $0x30] sm:$0xff]
    %v654 = vld [vmem:[%s646 + $0x38] sm:$0xff]
    %v655 = vld [vmem:[%s646 + $0x40] sm:$0xff]
    %v656 = vld [vmem:[%s646 + $0x48] sm:$0xff]
    %v657 = vld [vmem:[%s646 + $0x50] sm:$0xff]
    %v658 = vld [vmem:[%s646 + $0x58] sm:$0xff]
    %v659 = vld [vmem:[%s646 + $0x60] sm:$0xff]
    %v660 = vld [vmem:[%s646 + $0x68] sm:$0xff]
    %v661 = vld [vmem:[%s646 + $0x70] sm:$0xff]
    %v662 = vld [vmem:[%s646 + $0x78] sm:$0xff]
    %v663 = vld [vmem:[%s646 + $0x80] sm:$0xff]
    %v664 = vld [vmem:[%s646 + $0x88] sm:$0xff]
    %v665 = vld [vmem:[%s646 + $0x90] sm:$0xff]
    %v666 = vld [vmem:[%s646 + $0x98] sm:$0xff]
    %v667 = vld [vmem:[%s646 + $0xa0] sm:$0xff]
    %v668 = vld [vmem:[%s646 + $0xa8] sm:$0xff]
    %v669 = vld [vmem:[%s646 + $0xb0] sm:$0xff]
    %v670 = vld [vmem:[%s646 + $0xb8] sm:$0xff]
    %v671 = vld [vmem:[%s646 + $0xc0] sm:$0xff]
    %v672 = vld [vmem:[%s646 + $0xc8] sm:$0xff]
    %v673 = vld [vmem:[%s646 + $0xd0] sm:$0xff]
    %v674 = vld [vmem:[%s646 + $0xd8] sm:$0xff]
    %v675 = vld [vmem:[%s646 + $0xe0] sm:$0xff]
    %v676 = vld [vmem:[%s646 + $0xe8] sm:$0xff]
    %v677 = vld [vmem:[%s646 + $0xf0] sm:$0xff]
    %v678 = vld [vmem:[%s646 + $0xf8] sm:$0xff]
    %v679 = vpack.c.bf16 %v611, %v611
    %v680 = vpack.c.bf16 %v612, %v612
    %v681 = vlaneseq
    %v682 = vshrl.u32 %v681, 7
    %v683 = vsub.s32 3, %v682
    %v684 = vrot.slane %v34, %v683
    %v685 = vlaneseq
    %v686 = vshrl.u32 %v685, 7
    %v687 = vsub.s32 3, %v686
    %v688 = vrot.slane %v35, %v687
    %v721 = vunpack.c.l.b16 %v614
    %v722 = vunpack.c.h.b16 %v614
    %v723 = vunpack.c.l.b16 %v615
    %v724 = vunpack.c.h.b16 %v615
    %v725 = vunpack.c.l.b16 %v616
    %v726 = vunpack.c.h.b16 %v616
    %v727 = vunpack.c.l.b16 %v617
    %v728 = vunpack.c.h.b16 %v617
    %v729 = vunpack.c.l.b16 %v618
    %v730 = vunpack.c.h.b16 %v618
    %v731 = vunpack.c.l.b16 %v619
    %v732 = vunpack.c.h.b16 %v619
    %v733 = vunpack.c.l.b16 %v620
    %v734 = vunpack.c.h.b16 %v620
    %v735 = vunpack.c.l.b16 %v621
    %v736 = vunpack.c.h.b16 %v621
    %v737 = vunpack.c.l.b16 %v622
    %v738 = vunpack.c.h.b16 %v622
    %v739 = vunpack.c.l.b16 %v623
    %v740 = vunpack.c.h.b16 %v623
    %v741 = vunpack.c.l.b16 %v624
    %v742 = vunpack.c.h.b16 %v624
    %v743 = vunpack.c.l.b16 %v625
    %v744 = vunpack.c.h.b16 %v625
    %v745 = vunpack.c.l.b16 %v626
    %v746 = vunpack.c.h.b16 %v626
    %v747 = vunpack.c.l.b16 %v627
    %v748 = vunpack.c.h.b16 %v627
    %v749 = vunpack.c.l.b16 %v628
    %v750 = vunpack.c.h.b16 %v628
    %v751 = vunpack.c.l.b16 %v629
    %v752 = vunpack.c.h.b16 %v629
    %v753 = vunpack.c.l.b16 %v630
    %v754 = vunpack.c.h.b16 %v630
    %v755 = vunpack.c.l.b16 %v631
    %v756 = vunpack.c.h.b16 %v631
    %v757 = vunpack.c.l.b16 %v632
    %v758 = vunpack.c.h.b16 %v632
    %v759 = vunpack.c.l.b16 %v633
    %v760 = vunpack.c.h.b16 %v633
    %v761 = vunpack.c.l.b16 %v634
    %v762 = vunpack.c.h.b16 %v634
    %v763 = vunpack.c.l.b16 %v635
    %v764 = vunpack.c.h.b16 %v635
    %v765 = vunpack.c.l.b16 %v636
    %v766 = vunpack.c.h.b16 %v636
    %v767 = vunpack.c.l.b16 %v637
    %v768 = vunpack.c.h.b16 %v637
    %v769 = vunpack.c.l.b16 %v638
    %v770 = vunpack.c.h.b16 %v638
    %v771 = vunpack.c.l.b16 %v639
    %v772 = vunpack.c.h.b16 %v639
    %v773 = vunpack.c.l.b16 %v640
    %v774 = vunpack.c.h.b16 %v640
    %v775 = vunpack.c.l.b16 %v641
    %v776 = vunpack.c.h.b16 %v641
    %v777 = vunpack.c.l.b16 %v642
    %v778 = vunpack.c.h.b16 %v642
    %v779 = vunpack.c.l.b16 %v643
    %v780 = vunpack.c.h.b16 %v643
    %v781 = vunpack.c.l.b16 %v644
    %v782 = vunpack.c.h.b16 %v644
    %v783 = vunpack.c.l.b16 %v645
    %v784 = vunpack.c.h.b16 %v645
    %v785 = vpack.c.b16 %v723, %v721
    %v786 = vpack.c.b16 %v724, %v722
    %v787 = vpack.c.b16 %v727, %v725
    %v788 = vpack.c.b16 %v728, %v726
    %v789 = vpack.c.b16 %v731, %v729
    %v790 = vpack.c.b16 %v732, %v730
    %v791 = vpack.c.b16 %v735, %v733
    %v792 = vpack.c.b16 %v736, %v734
    %v793 = vpack.c.b16 %v739, %v737
    %v794 = vpack.c.b16 %v740, %v738
    %v795 = vpack.c.b16 %v743, %v741
    %v796 = vpack.c.b16 %v744, %v742
    %v797 = vpack.c.b16 %v747, %v745
    %v798 = vpack.c.b16 %v748, %v746
    %v799 = vpack.c.b16 %v751, %v749
    %v800 = vpack.c.b16 %v752, %v750
    %v801 = vpack.c.b16 %v755, %v753
    %v802 = vpack.c.b16 %v756, %v754
    %v803 = vpack.c.b16 %v759, %v757
    %v804 = vpack.c.b16 %v760, %v758
    %v805 = vpack.c.b16 %v763, %v761
    %v806 = vpack.c.b16 %v764, %v762
    %v807 = vpack.c.b16 %v767, %v765
    %v808 = vpack.c.b16 %v768, %v766
    %v809 = vpack.c.b16 %v771, %v769
    %v810 = vpack.c.b16 %v772, %v770
    %v811 = vpack.c.b16 %v775, %v773
    %v812 = vpack.c.b16 %v776, %v774
    %v813 = vpack.c.b16 %v779, %v777
    %v814 = vpack.c.b16 %v780, %v778
    %v815 = vpack.c.b16 %v783, %v781
    %v816 = vpack.c.b16 %v784, %v782
    %849 = vmatprep.subr.bf16.mxu0 %v800
    %850 = vmatpush1.bf16.msra.mxu0 %v799
    %851 = vmatprep.subr.bf16.mxu0 %v798
    %852 = vmatpush1.bf16.msra.mxu0 %v797
    %853 = vmatprep.subr.bf16.mxu0 %v796
    %854 = vmatpush1.bf16.msra.mxu0 %v795
    %855 = vmatprep.subr.bf16.mxu0 %v794
    %856 = vmatpush1.bf16.msra.mxu0 %v793
    %857 = vmatprep.subr.bf16.mxu0 %v792
    %858 = vmatpush1.bf16.msra.mxu0 %v791
    %859 = vmatprep.subr.bf16.mxu0 %v790
    %860 = vmatpush1.bf16.msra.mxu0 %v789
    %861 = vmatprep.subr.bf16.mxu0 %v788
    %862 = vmatpush1.bf16.msra.mxu0 %v787
    %863 = vmatprep.subr.bf16.mxu0 %v786
    %864 = vmatpush1.bf16.msra.mxu0 %v785
    %865 = vmatprep.subr.bf16.mxu0 %v816
    %866 = vmatpush2.bf16.msra.mxu0 %v815
    %867 = vmatprep.subr.bf16.mxu0 %v814
    %868 = vmatpush2.bf16.msra.mxu0 %v813
    %869 = vmatprep.subr.bf16.mxu0 %v812
    %870 = vmatpush2.bf16.msra.mxu0 %v811
    %871 = vmatprep.subr.bf16.mxu0 %v810
    %872 = vmatpush2.bf16.msra.mxu0 %v809
    %873 = vmatprep.subr.bf16.mxu0 %v808
    %874 = vmatpush2.bf16.msra.mxu0 %v807
    %875 = vmatprep.subr.bf16.mxu0 %v806
    %876 = vmatpush2.bf16.msra.mxu0 %v805
    %877 = vmatprep.subr.bf16.mxu0 %v804
    %878 = vmatpush2.bf16.msra.mxu0 %v803
    %879 = vmatprep.subr.bf16.mxu0 %v802
    %880 = vmatpush2.bf16.msra.mxu0 %v801
    %881 = vmatprep.mubr.bf16.mxu0 %v680
    %882 = vmatmul.mubr.bf16.gmra.mxu0 %v679
    %v883 = vpop.f32.mrf.mxu0
    %v884 = vadd.f32 %v684, %v883
    %v885 = vpop.f32.mrf.mxu0
    %v886 = vadd.f32 %v688, %v885
    %v887 = vpop.f32.mrf.mxu0
    %v888 = vpop.f32.mrf.mxu0
    %889 = vdwg.mxu0
    %v890 = vmax.f32 %v884, 0.0
    %v891 = vmax.f32 %v886, 0.0
    %v892 = vpack.c.bf16 %v890, %v890
    %v893 = vpack.c.bf16 %v891, %v891
    %v894 = vlaneseq
    %v895 = vshrl.u32 %v894, 7
    %v896 = vsub.s32 4, %v895
    %v897 = vrot.slane %v34, %v896
    %v898 = vlaneseq
    %v899 = vshrl.u32 %v898, 7
    %v900 = vsub.s32 4, %v899
    %v901 = vrot.slane %v35, %v900
    %v934 = vunpack.c.l.b16 %v647
    %v935 = vunpack.c.h.b16 %v647
    %v936 = vunpack.c.l.b16 %v648
    %v937 = vunpack.c.h.b16 %v648
    %v938 = vunpack.c.l.b16 %v649
    %v939 = vunpack.c.h.b16 %v649
    %v940 = vunpack.c.l.b16 %v650
    %v941 = vunpack.c.h.b16 %v650
    %v942 = vunpack.c.l.b16 %v651
    %v943 = vunpack.c.h.b16 %v651
    %v944 = vunpack.c.l.b16 %v652
    %v945 = vunpack.c.h.b16 %v652
    %v946 = vunpack.c.l.b16 %v653
    %v947 = vunpack.c.h.b16 %v653
    %v948 = vunpack.c.l.b16 %v654
    %v949 = vunpack.c.h.b16 %v654
    %v950 = vunpack.c.l.b16 %v655
    %v951 = vunpack.c.h.b16 %v655
    %v952 = vunpack.c.l.b16 %v656
    %v953 = vunpack.c.h.b16 %v656
    %v954 = vunpack.c.l.b16 %v657
    %v955 = vunpack.c.h.b16 %v657
    %v956 = vunpack.c.l.b16 %v658
    %v957 = vunpack.c.h.b16 %v658
    %v958 = vunpack.c.l.b16 %v659
    %v959 = vunpack.c.h.b16 %v659
    %v960 = vunpack.c.l.b16 %v660
    %v961 = vunpack.c.h.b16 %v660
    %v962 = vunpack.c.l.b16 %v661
    %v963 = vunpack.c.h.b16 %v661
    %v964 = vunpack.c.l.b16 %v662
    %v965 = vunpack.c.h.b16 %v662
    %v966 = vunpack.c.l.b16 %v663
    %v967 = vunpack.c.h.b16 %v663
    %v968 = vunpack.c.l.b16 %v664
    %v969 = vunpack.c.h.b16 %v664
    %v970 = vunpack.c.l.b16 %v665
    %v971 = vunpack.c.h.b16 %v665
    %v972 = vunpack.c.l.b16 %v666
    %v973 = vunpack.c.h.b16 %v666
    %v974 = vunpack.c.l.b16 %v667
    %v975 = vunpack.c.h.b16 %v667
    %v976 = vunpack.c.l.b16 %v668
    %v977 = vunpack.c.h.b16 %v668
    %v978 = vunpack.c.l.b16 %v669
    %v979 = vunpack.c.h.b16 %v669
    %v980 = vunpack.c.l.b16 %v670
    %v981 = vunpack.c.h.b16 %v670
    %v982 = vunpack.c.l.b16 %v671
    %v983 = vunpack.c.h.b16 %v671
    %v984 = vunpack.c.l.b16 %v672
    %v985 = vunpack.c.h.b16 %v672
    %v986 = vunpack.c.l.b16 %v673
    %v987 = vunpack.c.h.b16 %v673
    %v988 = vunpack.c.l.b16 %v674
    %v989 = vunpack.c.h.b16 %v674
    %v990 = vunpack.c.l.b16 %v675
    %v991 = vunpack.c.h.b16 %v675
    %v992 = vunpack.c.l.b16 %v676
    %v993 = vunpack.c.h.b16 %v676
    %v994 = vunpack.c.l.b16 %v677
    %v995 = vunpack.c.h.b16 %v677
    %v996 = vunpack.c.l.b16 %v678
    %v997 = vunpack.c.h.b16 %v678
    %v998 = vpack.c.b16 %v936, %v934
    %v999 = vpack.c.b16 %v937, %v935
    %v1000 = vpack.c.b16 %v940, %v938
    %v1001 = vpack.c.b16 %v941, %v939
    %v1002 = vpack.c.b16 %v944, %v942
    %v1003 = vpack.c.b16 %v945, %v943
    %v1004 = vpack.c.b16 %v948, %v946
    %v1005 = vpack.c.b16 %v949, %v947
    %v1006 = vpack.c.b16 %v952, %v950
    %v1007 = vpack.c.b16 %v953, %v951
    %v1008 = vpack.c.b16 %v956, %v954
    %v1009 = vpack.c.b16 %v957, %v955
    %v1010 = vpack.c.b16 %v960, %v958
    %v1011 = vpack.c.b16 %v961, %v959
    %v1012 = vpack.c.b16 %v964, %v962
    %v1013 = vpack.c.b16 %v965, %v963
    %v1014 = vpack.c.b16 %v968, %v966
    %v1015 = vpack.c.b16 %v969, %v967
    %v1016 = vpack.c.b16 %v972, %v970
    %v1017 = vpack.c.b16 %v973, %v971
    %v1018 = vpack.c.b16 %v976, %v974
    %v1019 = vpack.c.b16 %v977, %v975
    %v1020 = vpack.c.b16 %v980, %v978
    %v1021 = vpack.c.b16 %v981, %v979
    %v1022 = vpack.c.b16 %v984, %v982
    %v1023 = vpack.c.b16 %v985, %v983
    %v1024 = vpack.c.b16 %v988, %v986
    %v1025 = vpack.c.b16 %v989, %v987
    %v1026 = vpack.c.b16 %v992, %v990
    %v1027 = vpack.c.b16 %v993, %v991
    %v1028 = vpack.c.b16 %v996, %v994
    %v1029 = vpack.c.b16 %v997, %v995
    %1062 = vmatprep.subr.bf16.mxu0 %v1013
    %1063 = vmatpush1.bf16.msra.mxu0 %v1012
    %1064 = vmatprep.subr.bf16.mxu0 %v1011
    %1065 = vmatpush1.bf16.msra.mxu0 %v1010
    %1066 = vmatprep.subr.bf16.mxu0 %v1009
    %1067 = vmatpush1.bf16.msra.mxu0 %v1008
    %1068 = vmatprep.subr.bf16.mxu0 %v1007
    %1069 = vmatpush1.bf16.msra.mxu0 %v1006
    %1070 = vmatprep.subr.bf16.mxu0 %v1005
    %1071 = vmatpush1.bf16.msra.mxu0 %v1004
    %1072 = vmatprep.subr.bf16.mxu0 %v1003
    %1073 = vmatpush1.bf16.msra.mxu0 %v1002
    %1074 = vmatprep.subr.bf16.mxu0 %v1001
    %1075 = vmatpush1.bf16.msra.mxu0 %v1000
    %1076 = vmatprep.subr.bf16.mxu0 %v999
    %1077 = vmatpush1.bf16.msra.mxu0 %v998
    %1078 = vmatprep.subr.bf16.mxu0 %v1029
    %1079 = vmatpush2.bf16.msra.mxu0 %v1028
    %1080 = vmatprep.subr.bf16.mxu0 %v1027
    %1081 = vmatpush2.bf16.msra.mxu0 %v1026
    %1082 = vmatprep.subr.bf16.mxu0 %v1025
    %1083 = vmatpush2.bf16.msra.mxu0 %v1024
    %1084 = vmatprep.subr.bf16.mxu0 %v1023
    %1085 = vmatpush2.bf16.msra.mxu0 %v1022
    %1086 = vmatprep.subr.bf16.mxu0 %v1021
    %1087 = vmatpush2.bf16.msra.mxu0 %v1020
    %1088 = vmatprep.subr.bf16.mxu0 %v1019
    %1089 = vmatpush2.bf16.msra.mxu0 %v1018
    %1090 = vmatprep.subr.bf16.mxu0 %v1017
    %1091 = vmatpush2.bf16.msra.mxu0 %v1016
    %1092 = vmatprep.subr.bf16.mxu0 %v1015
    %1093 = vmatpush2.bf16.msra.mxu0 %v1014
    %1094 = vmatprep.mubr.bf16.mxu0 %v893
    %1095 = vmatmul.mubr.bf16.gmra.mxu0 %v892
    %v1096 = vpop.f32.mrf.mxu0
    %v1097 = vadd.f32 %v897, %v1096
    %v1098 = vpop.f32.mrf.mxu0
    %v1099 = vadd.f32 %v901, %v1098
    %v1100 = vpop.f32.mrf.mxu0
    %v1101 = vpop.f32.mrf.mxu0
    %1102 = vdwg.mxu0
    %v1103 = vadd.f32 %v611, %v1097
    %v1104 = vadd.f32 %v612, %v1099
    %v1105 = vmax.f32 %v1103, 0.0
    %v1106 = vmax.f32 %v1104, 0.0
    %v1107 = vlaneseq
    %v1108 = vshrl.u32 %v1107, 7
    %v1109 = vsub.s32 5, %v1108
    %v1110 = vrot.slane %v34, %v1109
    %v1111 = vlaneseq
    %v1112 = vshrl.u32 %v1111, 7
    %v1113 = vsub.s32 5, %v1112
    %v1114 = vrot.slane %v35, %v1113
    %v1115 = vmul.f32 %v1105, %v1110
    %v1116 = vmul.f32 %v1106, %v1114
    %v1117 = vadd.f32 %v1115, %v1116
    %1118 = vadd.xlane.f32.xlu0 %v1117
    %v1119 = vpop.xlane.xlu0 %1118
    %v1120 = vlaneseq
    %v1121 = vshrl.u32 %v1120, 7
    %v1122 = vsub.s32 6, %v1121
    %v1123 = vrot.slane %v34, %v1122
    %v1124 = vadd.f32 %v1119, %v1123
    %vm1125 = vcmask 7168
    %1126 = vst.msk [vmem:[%s4] sm:$0xff] %vm1125, %v1124
    %s1127 = scalar_lea.vmem %s3, 16
    %v1128 = vld [vmem:[%s1127] sm:$0xff]
    %v1129 = vld [vmem:[%s1127 + $0x8] sm:$0xff]
    %s1130 = scalar_lea.vmem %s1, 32
    %v1131 = vld [vmem:[%s1130] sm:$0xff]
    %v1132 = vld [vmem:[%s1130 + $0x8] sm:$0xff]
    %v1133 = vld [vmem:[%s1130 + $0x10] sm:$0xff]
    %v1134 = vld [vmem:[%s1130 + $0x18] sm:$0x11]
    %v1135 = vlaneseq
    %v1136 = vshrl.u32 %v1135, 7
    %v1137 = vsub.s32 0, %v1136
    %v1138 = vrot.slane %v1128, %v1137
    %v1139 = vlaneseq
    %v1140 = vshrl.u32 %v1139, 7
    %v1141 = vsub.s32 0, %v1140
    %v1142 = vrot.slane %v1129, %v1141
    %v1147 = vunpack.c.l.b16 %v1131
    %v1148 = vunpack.c.h.b16 %v1131
    %v1149 = vunpack.c.l.b16 %v1132
    %v1150 = vunpack.c.h.b16 %v1132
    %v1151 = vunpack.c.l.b16 %v1133
    %v1152 = vunpack.c.h.b16 %v1133
    %v1153 = vunpack.c.l.b16 %v1134
    %v1154 = vunpack.c.h.b16 %v1134
    %v1155 = vpack.c.b16 %v1149, %v1147
    %v1156 = vpack.c.b16 %v1150, %v1148
    %v1157 = vpack.c.b16 %v1153, %v1151
    %v1158 = vpack.c.b16 %v1154, %v1152
    %v1162 = vsel %vm70, %v1157, 0
    %v1165 = vsel %vm70, %v1158, 0
    %1167 = vmatprep.subr.bf16.mxu0 0
    %1168 = vmatpush1.bf16.msra.mxu0 0
    %1169 = vmatprep.subr.bf16.mxu0 0
    %1170 = vmatpush1.bf16.msra.mxu0 0
    %1171 = vmatprep.subr.bf16.mxu0 0
    %1172 = vmatpush1.bf16.msra.mxu0 0
    %1173 = vmatprep.subr.bf16.mxu0 0
    %1174 = vmatpush1.bf16.msra.mxu0 0
    %1175 = vmatprep.subr.bf16.mxu0 0
    %1176 = vmatpush1.bf16.msra.mxu0 0
    %1177 = vmatprep.subr.bf16.mxu0 0
    %1178 = vmatpush1.bf16.msra.mxu0 0
    %1179 = vmatprep.subr.bf16.mxu0 %v1165
    %1180 = vmatpush1.bf16.msra.mxu0 %v1162
    %1181 = vmatprep.subr.bf16.mxu0 %v1156
    %1182 = vmatpush1.bf16.msra.mxu0 %v1155
    %1183 = vmatprep.subr.bf16.mxu0 0
    %1184 = vmatpush2.bf16.msra.mxu0 0
    %1185 = vmatprep.subr.bf16.mxu0 0
    %1186 = vmatpush2.bf16.msra.mxu0 0
    %1187 = vmatprep.subr.bf16.mxu0 0
    %1188 = vmatpush2.bf16.msra.mxu0 0
    %1189 = vmatprep.subr.bf16.mxu0 0
    %1190 = vmatpush2.bf16.msra.mxu0 0
    %1191 = vmatprep.subr.bf16.mxu0 0
    %1192 = vmatpush2.bf16.msra.mxu0 0
    %1193 = vmatprep.subr.bf16.mxu0 0
    %1194 = vmatpush2.bf16.msra.mxu0 0
    %1195 = vmatprep.subr.bf16.mxu0 0
    %1196 = vmatpush2.bf16.msra.mxu0 0
    %1197 = vmatprep.subr.bf16.mxu0 0
    %1198 = vmatpush2.bf16.msra.mxu0 0
    %1199 = vmatprep.mubr.bf16.mxu0 0
    %1200 = vmatmul.mubr.bf16.gmra.mxu0 %v68
    %v1201 = vpop.f32.mrf.mxu0
    %v1202 = vadd.f32 %v1138, %v1201
    %v1203 = vpop.f32.mrf.mxu0
    %v1204 = vadd.f32 %v1142, %v1203
    %v1205 = vpop.f32.mrf.mxu0
    %v1206 = vpop.f32.mrf.mxu0
    %1207 = vdwg.mxu0
    %v1208 = vmax.f32 %v1202, 0.0
    %v1209 = vmax.f32 %v1204, 0.0
    %s1210 = scalar_lea.vmem [#allocation2], 1024
    %v1211 = vld [vmem:[%s1210] sm:$0xff]
    %v1212 = vld [vmem:[%s1210 + $0x8] sm:$0xff]
    %v1213 = vld [vmem:[%s1210 + $0x10] sm:$0xff]
    %v1214 = vld [vmem:[%s1210 + $0x18] sm:$0xff]
    %v1215 = vld [vmem:[%s1210 + $0x20] sm:$0xff]
    %v1216 = vld [vmem:[%s1210 + $0x28] sm:$0xff]
    %v1217 = vld [vmem:[%s1210 + $0x30] sm:$0xff]
    %v1218 = vld [vmem:[%s1210 + $0x38] sm:$0xff]
    %v1219 = vld [vmem:[%s1210 + $0x40] sm:$0xff]
    %v1220 = vld [vmem:[%s1210 + $0x48] sm:$0xff]
    %v1221 = vld [vmem:[%s1210 + $0x50] sm:$0xff]
    %v1222 = vld [vmem:[%s1210 + $0x58] sm:$0xff]
    %v1223 = vld [vmem:[%s1210 + $0x60] sm:$0xff]
    %v1224 = vld [vmem:[%s1210 + $0x68] sm:$0xff]
    %v1225 = vld [vmem:[%s1210 + $0x70] sm:$0xff]
    %v1226 = vld [vmem:[%s1210 + $0x78] sm:$0xff]
    %v1227 = vld [vmem:[%s1210 + $0x80] sm:$0xff]
    %v1228 = vld [vmem:[%s1210 + $0x88] sm:$0xff]
    %v1229 = vld [vmem:[%s1210 + $0x90] sm:$0xff]
    %v1230 = vld [vmem:[%s1210 + $0x98] sm:$0xff]
    %v1231 = vld [vmem:[%s1210 + $0xa0] sm:$0xff]
    %v1232 = vld [vmem:[%s1210 + $0xa8] sm:$0xff]
    %v1233 = vld [vmem:[%s1210 + $0xb0] sm:$0xff]
    %v1234 = vld [vmem:[%s1210 + $0xb8] sm:$0xff]
    %v1235 = vld [vmem:[%s1210 + $0xc0] sm:$0xff]
    %v1236 = vld [vmem:[%s1210 + $0xc8] sm:$0xff]
    %v1237 = vld [vmem:[%s1210 + $0xd0] sm:$0xff]
    %v1238 = vld [vmem:[%s1210 + $0xd8] sm:$0xff]
    %v1239 = vld [vmem:[%s1210 + $0xe0] sm:$0xff]
    %v1240 = vld [vmem:[%s1210 + $0xe8] sm:$0xff]
    %v1241 = vld [vmem:[%s1210 + $0xf0] sm:$0xff]
    %v1242 = vld [vmem:[%s1210 + $0xf8] sm:$0xff]
    %s1243 = scalar_lea.vmem [#allocation2], 1280
    %v1244 = vld [vmem:[%s1243] sm:$0xff]
    %v1245 = vld [vmem:[%s1243 + $0x8] sm:$0xff]
    %v1246 = vld [vmem:[%s1243 + $0x10] sm:$0xff]
    %v1247 = vld [vmem:[%s1243 + $0x18] sm:$0xff]
    %v1248 = vld [vmem:[%s1243 + $0x20] sm:$0xff]
    %v1249 = vld [vmem:[%s1243 + $0x28] sm:$0xff]
    %v1250 = vld [vmem:[%s1243 + $0x30] sm:$0xff]
    %v1251 = vld [vmem:[%s1243 + $0x38] sm:$0xff]
    %v1252 = vld [vmem:[%s1243 + $0x40] sm:$0xff]
    %v1253 = vld [vmem:[%s1243 + $0x48] sm:$0xff]
    %v1254 = vld [vmem:[%s1243 + $0x50] sm:$0xff]
    %v1255 = vld [vmem:[%s1243 + $0x58] sm:$0xff]
    %v1256 = vld [vmem:[%s1243 + $0x60] sm:$0xff]
    %v1257 = vld [vmem:[%s1243 + $0x68] sm:$0xff]
    %v1258 = vld [vmem:[%s1243 + $0x70] sm:$0xff]
    %v1259 = vld [vmem:[%s1243 + $0x78] sm:$0xff]
    %v1260 = vld [vmem:[%s1243 + $0x80] sm:$0xff]
    %v1261 = vld [vmem:[%s1243 + $0x88] sm:$0xff]
    %v1262 = vld [vmem:[%s1243 + $0x90] sm:$0xff]
    %v1263 = vld [vmem:[%s1243 + $0x98] sm:$0xff]
    %v1264 = vld [vmem:[%s1243 + $0xa0] sm:$0xff]
    %v1265 = vld [vmem:[%s1243 + $0xa8] sm:$0xff]
    %v1266 = vld [vmem:[%s1243 + $0xb0] sm:$0xff]
    %v1267 = vld [vmem:[%s1243 + $0xb8] sm:$0xff]
    %v1268 = vld [vmem:[%s1243 + $0xc0] sm:$0xff]
    %v1269 = vld [vmem:[%s1243 + $0xc8] sm:$0xff]
    %v1270 = vld [vmem:[%s1243 + $0xd0] sm:$0xff]
    %v1271 = vld [vmem:[%s1243 + $0xd8] sm:$0xff]
    %v1272 = vld [vmem:[%s1243 + $0xe0] sm:$0xff]
    %v1273 = vld [vmem:[%s1243 + $0xe8] sm:$0xff]
    %v1274 = vld [vmem:[%s1243 + $0xf0] sm:$0xff]
    %v1275 = vld [vmem:[%s1243 + $0xf8] sm:$0xff]
    %v1276 = vpack.c.bf16 %v1208, %v1208
    %v1277 = vpack.c.bf16 %v1209, %v1209
    %v1278 = vlaneseq
    %v1279 = vshrl.u32 %v1278, 7
    %v1280 = vsub.s32 1, %v1279
    %v1281 = vrot.slane %v1128, %v1280
    %v1282 = vlaneseq
    %v1283 = vshrl.u32 %v1282, 7
    %v1284 = vsub.s32 1, %v1283
    %v1285 = vrot.slane %v1129, %v1284
    %v1318 = vunpack.c.l.b16 %v1211
    %v1319 = vunpack.c.h.b16 %v1211
    %v1320 = vunpack.c.l.b16 %v1212
    %v1321 = vunpack.c.h.b16 %v1212
    %v1322 = vunpack.c.l.b16 %v1213
    %v1323 = vunpack.c.h.b16 %v1213
    %v1324 = vunpack.c.l.b16 %v1214
    %v1325 = vunpack.c.h.b16 %v1214
    %v1326 = vunpack.c.l.b16 %v1215
    %v1327 = vunpack.c.h.b16 %v1215
    %v1328 = vunpack.c.l.b16 %v1216
    %v1329 = vunpack.c.h.b16 %v1216
    %v1330 = vunpack.c.l.b16 %v1217
    %v1331 = vunpack.c.h.b16 %v1217
    %v1332 = vunpack.c.l.b16 %v1218
    %v1333 = vunpack.c.h.b16 %v1218
    %v1334 = vunpack.c.l.b16 %v1219
    %v1335 = vunpack.c.h.b16 %v1219
    %v1336 = vunpack.c.l.b16 %v1220
    %v1337 = vunpack.c.h.b16 %v1220
    %v1338 = vunpack.c.l.b16 %v1221
    %v1339 = vunpack.c.h.b16 %v1221
    %v1340 = vunpack.c.l.b16 %v1222
    %v1341 = vunpack.c.h.b16 %v1222
    %v1342 = vunpack.c.l.b16 %v1223
    %v1343 = vunpack.c.h.b16 %v1223
    %v1344 = vunpack.c.l.b16 %v1224
    %v1345 = vunpack.c.h.b16 %v1224
    %v1346 = vunpack.c.l.b16 %v1225
    %v1347 = vunpack.c.h.b16 %v1225
    %v1348 = vunpack.c.l.b16 %v1226
    %v1349 = vunpack.c.h.b16 %v1226
    %v1350 = vunpack.c.l.b16 %v1227
    %v1351 = vunpack.c.h.b16 %v1227
    %v1352 = vunpack.c.l.b16 %v1228
    %v1353 = vunpack.c.h.b16 %v1228
    %v1354 = vunpack.c.l.b16 %v1229
    %v1355 = vunpack.c.h.b16 %v1229
    %v1356 = vunpack.c.l.b16 %v1230
    %v1357 = vunpack.c.h.b16 %v1230
    %v1358 = vunpack.c.l.b16 %v1231
    %v1359 = vunpack.c.h.b16 %v1231
    %v1360 = vunpack.c.l.b16 %v1232
    %v1361 = vunpack.c.h.b16 %v1232
    %v1362 = vunpack.c.l.b16 %v1233
    %v1363 = vunpack.c.h.b16 %v1233
    %v1364 = vunpack.c.l.b16 %v1234
    %v1365 = vunpack.c.h.b16 %v1234
    %v1366 = vunpack.c.l.b16 %v1235
    %v1367 = vunpack.c.h.b16 %v1235
    %v1368 = vunpack.c.l.b16 %v1236
    %v1369 = vunpack.c.h.b16 %v1236
    %v1370 = vunpack.c.l.b16 %v1237
    %v1371 = vunpack.c.h.b16 %v1237
    %v1372 = vunpack.c.l.b16 %v1238
    %v1373 = vunpack.c.h.b16 %v1238
    %v1374 = vunpack.c.l.b16 %v1239
    %v1375 = vunpack.c.h.b16 %v1239
    %v1376 = vunpack.c.l.b16 %v1240
    %v1377 = vunpack.c.h.b16 %v1240
    %v1378 = vunpack.c.l.b16 %v1241
    %v1379 = vunpack.c.h.b16 %v1241
    %v1380 = vunpack.c.l.b16 %v1242
    %v1381 = vunpack.c.h.b16 %v1242
    %v1382 = vpack.c.b16 %v1320, %v1318
    %v1383 = vpack.c.b16 %v1321, %v1319
    %v1384 = vpack.c.b16 %v1324, %v1322
    %v1385 = vpack.c.b16 %v1325, %v1323
    %v1386 = vpack.c.b16 %v1328, %v1326
    %v1387 = vpack.c.b16 %v1329, %v1327
    %v1388 = vpack.c.b16 %v1332, %v1330
    %v1389 = vpack.c.b16 %v1333, %v1331
    %v1390 = vpack.c.b16 %v1336, %v1334
    %v1391 = vpack.c.b16 %v1337, %v1335
    %v1392 = vpack.c.b16 %v1340, %v1338
    %v1393 = vpack.c.b16 %v1341, %v1339
    %v1394 = vpack.c.b16 %v1344, %v1342
    %v1395 = vpack.c.b16 %v1345, %v1343
    %v1396 = vpack.c.b16 %v1348, %v1346
    %v1397 = vpack.c.b16 %v1349, %v1347
    %v1398 = vpack.c.b16 %v1352, %v1350
    %v1399 = vpack.c.b16 %v1353, %v1351
    %v1400 = vpack.c.b16 %v1356, %v1354
    %v1401 = vpack.c.b16 %v1357, %v1355
    %v1402 = vpack.c.b16 %v1360, %v1358
    %v1403 = vpack.c.b16 %v1361, %v1359
    %v1404 = vpack.c.b16 %v1364, %v1362
    %v1405 = vpack.c.b16 %v1365, %v1363
    %v1406 = vpack.c.b16 %v1368, %v1366
    %v1407 = vpack.c.b16 %v1369, %v1367
    %v1408 = vpack.c.b16 %v1372, %v1370
    %v1409 = vpack.c.b16 %v1373, %v1371
    %v1410 = vpack.c.b16 %v1376, %v1374
    %v1411 = vpack.c.b16 %v1377, %v1375
    %v1412 = vpack.c.b16 %v1380, %v1378
    %v1413 = vpack.c.b16 %v1381, %v1379
    %1446 = vmatprep.subr.bf16.mxu0 %v1397
    %1447 = vmatpush1.bf16.msra.mxu0 %v1396
    %1448 = vmatprep.subr.bf16.mxu0 %v1395
    %1449 = vmatpush1.bf16.msra.mxu0 %v1394
    %1450 = vmatprep.subr.bf16.mxu0 %v1393
    %1451 = vmatpush1.bf16.msra.mxu0 %v1392
    %1452 = vmatprep.subr.bf16.mxu0 %v1391
    %1453 = vmatpush1.bf16.msra.mxu0 %v1390
    %1454 = vmatprep.subr.bf16.mxu0 %v1389
    %1455 = vmatpush1.bf16.msra.mxu0 %v1388
    %1456 = vmatprep.subr.bf16.mxu0 %v1387
    %1457 = vmatpush1.bf16.msra.mxu0 %v1386
    %1458 = vmatprep.subr.bf16.mxu0 %v1385
    %1459 = vmatpush1.bf16.msra.mxu0 %v1384
    %1460 = vmatprep.subr.bf16.mxu0 %v1383
    %1461 = vmatpush1.bf16.msra.mxu0 %v1382
    %1462 = vmatprep.subr.bf16.mxu0 %v1413
    %1463 = vmatpush2.bf16.msra.mxu0 %v1412
    %1464 = vmatprep.subr.bf16.mxu0 %v1411
    %1465 = vmatpush2.bf16.msra.mxu0 %v1410
    %1466 = vmatprep.subr.bf16.mxu0 %v1409
    %1467 = vmatpush2.bf16.msra.mxu0 %v1408
    %1468 = vmatprep.subr.bf16.mxu0 %v1407
    %1469 = vmatpush2.bf16.msra.mxu0 %v1406
    %1470 = vmatprep.subr.bf16.mxu0 %v1405
    %1471 = vmatpush2.bf16.msra.mxu0 %v1404
    %1472 = vmatprep.subr.bf16.mxu0 %v1403
    %1473 = vmatpush2.bf16.msra.mxu0 %v1402
    %1474 = vmatprep.subr.bf16.mxu0 %v1401
    %1475 = vmatpush2.bf16.msra.mxu0 %v1400
    %1476 = vmatprep.subr.bf16.mxu0 %v1399
    %1477 = vmatpush2.bf16.msra.mxu0 %v1398
    %1478 = vmatprep.mubr.bf16.mxu0 %v1277
    %1479 = vmatmul.mubr.bf16.gmra.mxu0 %v1276
    %v1480 = vpop.f32.mrf.mxu0
    %v1481 = vadd.f32 %v1281, %v1480
    %v1482 = vpop.f32.mrf.mxu0
    %v1483 = vadd.f32 %v1285, %v1482
    %v1484 = vpop.f32.mrf.mxu0
    %v1485 = vpop.f32.mrf.mxu0
    %1486 = vdwg.mxu0
    %v1487 = vmax.f32 %v1481, 0.0
    %v1488 = vmax.f32 %v1483, 0.0
    %v1489 = vpack.c.bf16 %v1487, %v1487
    %v1490 = vpack.c.bf16 %v1488, %v1488
    %v1491 = vlaneseq
    %v1492 = vshrl.u32 %v1491, 7
    %v1493 = vsub.s32 2, %v1492
    %v1494 = vrot.slane %v1128, %v1493
    %v1495 = vlaneseq
    %v1496 = vshrl.u32 %v1495, 7
    %v1497 = vsub.s32 2, %v1496
    %v1498 = vrot.slane %v1129, %v1497
    %v1531 = vunpack.c.l.b16 %v1244
    %v1532 = vunpack.c.h.b16 %v1244
    %v1533 = vunpack.c.l.b16 %v1245
    %v1534 = vunpack.c.h.b16 %v1245
    %v1535 = vunpack.c.l.b16 %v1246
    %v1536 = vunpack.c.h.b16 %v1246
    %v1537 = vunpack.c.l.b16 %v1247
    %v1538 = vunpack.c.h.b16 %v1247
    %v1539 = vunpack.c.l.b16 %v1248
    %v1540 = vunpack.c.h.b16 %v1248
    %v1541 = vunpack.c.l.b16 %v1249
    %v1542 = vunpack.c.h.b16 %v1249
    %v1543 = vunpack.c.l.b16 %v1250
    %v1544 = vunpack.c.h.b16 %v1250
    %v1545 = vunpack.c.l.b16 %v1251
    %v1546 = vunpack.c.h.b16 %v1251
    %v1547 = vunpack.c.l.b16 %v1252
    %v1548 = vunpack.c.h.b16 %v1252
    %v1549 = vunpack.c.l.b16 %v1253
    %v1550 = vunpack.c.h.b16 %v1253
    %v1551 = vunpack.c.l.b16 %v1254
    %v1552 = vunpack.c.h.b16 %v1254
    %v1553 = vunpack.c.l.b16 %v1255
    %v1554 = vunpack.c.h.b16 %v1255
    %v1555 = vunpack.c.l.b16 %v1256
    %v1556 = vunpack.c.h.b16 %v1256
    %v1557 = vunpack.c.l.b16 %v1257
    %v1558 = vunpack.c.h.b16 %v1257
    %v1559 = vunpack.c.l.b16 %v1258
    %v1560 = vunpack.c.h.b16 %v1258
    %v1561 = vunpack.c.l.b16 %v1259
    %v1562 = vunpack.c.h.b16 %v1259
    %v1563 = vunpack.c.l.b16 %v1260
    %v1564 = vunpack.c.h.b16 %v1260
    %v1565 = vunpack.c.l.b16 %v1261
    %v1566 = vunpack.c.h.b16 %v1261
    %v1567 = vunpack.c.l.b16 %v1262
    %v1568 = vunpack.c.h.b16 %v1262
    %v1569 = vunpack.c.l.b16 %v1263
    %v1570 = vunpack.c.h.b16 %v1263
    %v1571 = vunpack.c.l.b16 %v1264
    %v1572 = vunpack.c.h.b16 %v1264
    %v1573 = vunpack.c.l.b16 %v1265
    %v1574 = vunpack.c.h.b16 %v1265
    %v1575 = vunpack.c.l.b16 %v1266
    %v1576 = vunpack.c.h.b16 %v1266
    %v1577 = vunpack.c.l.b16 %v1267
    %v1578 = vunpack.c.h.b16 %v1267
    %v1579 = vunpack.c.l.b16 %v1268
    %v1580 = vunpack.c.h.b16 %v1268
    %v1581 = vunpack.c.l.b16 %v1269
    %v1582 = vunpack.c.h.b16 %v1269
    %v1583 = vunpack.c.l.b16 %v1270
    %v1584 = vunpack.c.h.b16 %v1270
    %v1585 = vunpack.c.l.b16 %v1271
    %v1586 = vunpack.c.h.b16 %v1271
    %v1587 = vunpack.c.l.b16 %v1272
    %v1588 = vunpack.c.h.b16 %v1272
    %v1589 = vunpack.c.l.b16 %v1273
    %v1590 = vunpack.c.h.b16 %v1273
    %v1591 = vunpack.c.l.b16 %v1274
    %v1592 = vunpack.c.h.b16 %v1274
    %v1593 = vunpack.c.l.b16 %v1275
    %v1594 = vunpack.c.h.b16 %v1275
    %v1595 = vpack.c.b16 %v1533, %v1531
    %v1596 = vpack.c.b16 %v1534, %v1532
    %v1597 = vpack.c.b16 %v1537, %v1535
    %v1598 = vpack.c.b16 %v1538, %v1536
    %v1599 = vpack.c.b16 %v1541, %v1539
    %v1600 = vpack.c.b16 %v1542, %v1540
    %v1601 = vpack.c.b16 %v1545, %v1543
    %v1602 = vpack.c.b16 %v1546, %v1544
    %v1603 = vpack.c.b16 %v1549, %v1547
    %v1604 = vpack.c.b16 %v1550, %v1548
    %v1605 = vpack.c.b16 %v1553, %v1551
    %v1606 = vpack.c.b16 %v1554, %v1552
    %v1607 = vpack.c.b16 %v1557, %v1555
    %v1608 = vpack.c.b16 %v1558, %v1556
    %v1609 = vpack.c.b16 %v1561, %v1559
    %v1610 = vpack.c.b16 %v1562, %v1560
    %v1611 = vpack.c.b16 %v1565, %v1563
    %v1612 = vpack.c.b16 %v1566, %v1564
    %v1613 = vpack.c.b16 %v1569, %v1567
    %v1614 = vpack.c.b16 %v1570, %v1568
    %v1615 = vpack.c.b16 %v1573, %v1571
    %v1616 = vpack.c.b16 %v1574, %v1572
    %v1617 = vpack.c.b16 %v1577, %v1575
    %v1618 = vpack.c.b16 %v1578, %v1576
    %v1619 = vpack.c.b16 %v1581, %v1579
    %v1620 = vpack.c.b16 %v1582, %v1580
    %v1621 = vpack.c.b16 %v1585, %v1583
    %v1622 = vpack.c.b16 %v1586, %v1584
    %v1623 = vpack.c.b16 %v1589, %v1587
    %v1624 = vpack.c.b16 %v1590, %v1588
    %v1625 = vpack.c.b16 %v1593, %v1591
    %v1626 = vpack.c.b16 %v1594, %v1592
    %1659 = vmatprep.subr.bf16.mxu0 %v1610
    %1660 = vmatpush1.bf16.msra.mxu0 %v1609
    %1661 = vmatprep.subr.bf16.mxu0 %v1608
    %1662 = vmatpush1.bf16.msra.mxu0 %v1607
    %1663 = vmatprep.subr.bf16.mxu0 %v1606
    %1664 = vmatpush1.bf16.msra.mxu0 %v1605
    %1665 = vmatprep.subr.bf16.mxu0 %v1604
    %1666 = vmatpush1.bf16.msra.mxu0 %v1603
    %1667 = vmatprep.subr.bf16.mxu0 %v1602
    %1668 = vmatpush1.bf16.msra.mxu0 %v1601
    %1669 = vmatprep.subr.bf16.mxu0 %v1600
    %1670 = vmatpush1.bf16.msra.mxu0 %v1599
    %1671 = vmatprep.subr.bf16.mxu0 %v1598
    %1672 = vmatpush1.bf16.msra.mxu0 %v1597
    %1673 = vmatprep.subr.bf16.mxu0 %v1596
    %1674 = vmatpush1.bf16.msra.mxu0 %v1595
    %1675 = vmatprep.subr.bf16.mxu0 %v1626
    %1676 = vmatpush2.bf16.msra.mxu0 %v1625
    %1677 = vmatprep.subr.bf16.mxu0 %v1624
    %1678 = vmatpush2.bf16.msra.mxu0 %v1623
    %1679 = vmatprep.subr.bf16.mxu0 %v1622
    %1680 = vmatpush2.bf16.msra.mxu0 %v1621
    %1681 = vmatprep.subr.bf16.mxu0 %v1620
    %1682 = vmatpush2.bf16.msra.mxu0 %v1619
    %1683 = vmatprep.subr.bf16.mxu0 %v1618
    %1684 = vmatpush2.bf16.msra.mxu0 %v1617
    %1685 = vmatprep.subr.bf16.mxu0 %v1616
    %1686 = vmatpush2.bf16.msra.mxu0 %v1615
    %1687 = vmatprep.subr.bf16.mxu0 %v1614
    %1688 = vmatpush2.bf16.msra.mxu0 %v1613
    %1689 = vmatprep.subr.bf16.mxu0 %v1612
    %1690 = vmatpush2.bf16.msra.mxu0 %v1611
    %1691 = vmatprep.mubr.bf16.mxu0 %v1490
    %1692 = vmatmul.mubr.bf16.gmra.mxu0 %v1489
    %v1693 = vpop.f32.mrf.mxu0
    %v1694 = vadd.f32 %v1494, %v1693
    %v1695 = vpop.f32.mrf.mxu0
    %v1696 = vadd.f32 %v1498, %v1695
    %v1697 = vpop.f32.mrf.mxu0
    %v1698 = vpop.f32.mrf.mxu0
    %1699 = vdwg.mxu0
    %v1700 = vadd.f32 %v1208, %v1694
    %v1701 = vadd.f32 %v1209, %v1696
    %v1702 = vmax.f32 %v1700, 0.0
    %v1703 = vmax.f32 %v1701, 0.0
    %s1704 = scalar_lea.vmem [#allocation2], 1536
    %v1705 = vld [vmem:[%s1704] sm:$0xff]
    %v1706 = vld [vmem:[%s1704 + $0x8] sm:$0xff]
    %v1707 = vld [vmem:[%s1704 + $0x10] sm:$0xff]
    %v1708 = vld [vmem:[%s1704 + $0x18] sm:$0xff]
    %v1709 = vld [vmem:[%s1704 + $0x20] sm:$0xff]
    %v1710 = vld [vmem:[%s1704 + $0x28] sm:$0xff]
    %v1711 = vld [vmem:[%s1704 + $0x30] sm:$0xff]
    %v1712 = vld [vmem:[%s1704 + $0x38] sm:$0xff]
    %v1713 = vld [vmem:[%s1704 + $0x40] sm:$0xff]
    %v1714 = vld [vmem:[%s1704 + $0x48] sm:$0xff]
    %v1715 = vld [vmem:[%s1704 + $0x50] sm:$0xff]
    %v1716 = vld [vmem:[%s1704 + $0x58] sm:$0xff]
    %v1717 = vld [vmem:[%s1704 + $0x60] sm:$0xff]
    %v1718 = vld [vmem:[%s1704 + $0x68] sm:$0xff]
    %v1719 = vld [vmem:[%s1704 + $0x70] sm:$0xff]
    %v1720 = vld [vmem:[%s1704 + $0x78] sm:$0xff]
    %v1721 = vld [vmem:[%s1704 + $0x80] sm:$0xff]
    %v1722 = vld [vmem:[%s1704 + $0x88] sm:$0xff]
    %v1723 = vld [vmem:[%s1704 + $0x90] sm:$0xff]
    %v1724 = vld [vmem:[%s1704 + $0x98] sm:$0xff]
    %v1725 = vld [vmem:[%s1704 + $0xa0] sm:$0xff]
    %v1726 = vld [vmem:[%s1704 + $0xa8] sm:$0xff]
    %v1727 = vld [vmem:[%s1704 + $0xb0] sm:$0xff]
    %v1728 = vld [vmem:[%s1704 + $0xb8] sm:$0xff]
    %v1729 = vld [vmem:[%s1704 + $0xc0] sm:$0xff]
    %v1730 = vld [vmem:[%s1704 + $0xc8] sm:$0xff]
    %v1731 = vld [vmem:[%s1704 + $0xd0] sm:$0xff]
    %v1732 = vld [vmem:[%s1704 + $0xd8] sm:$0xff]
    %v1733 = vld [vmem:[%s1704 + $0xe0] sm:$0xff]
    %v1734 = vld [vmem:[%s1704 + $0xe8] sm:$0xff]
    %v1735 = vld [vmem:[%s1704 + $0xf0] sm:$0xff]
    %v1736 = vld [vmem:[%s1704 + $0xf8] sm:$0xff]
    %s1737 = scalar_lea.vmem [#allocation2], 1792
    %v1738 = vld [vmem:[%s1737] sm:$0xff]
    %v1739 = vld [vmem:[%s1737 + $0x8] sm:$0xff]
    %v1740 = vld [vmem:[%s1737 + $0x10] sm:$0xff]
    %v1741 = vld [vmem:[%s1737 + $0x18] sm:$0xff]
    %v1742 = vld [vmem:[%s1737 + $0x20] sm:$0xff]
    %v1743 = vld [vmem:[%s1737 + $0x28] sm:$0xff]
    %v1744 = vld [vmem:[%s1737 + $0x30] sm:$0xff]
    %v1745 = vld [vmem:[%s1737 + $0x38] sm:$0xff]
    %v1746 = vld [vmem:[%s1737 + $0x40] sm:$0xff]
    %v1747 = vld [vmem:[%s1737 + $0x48] sm:$0xff]
    %v1748 = vld [vmem:[%s1737 + $0x50] sm:$0xff]
    %v1749 = vld [vmem:[%s1737 + $0x58] sm:$0xff]
    %v1750 = vld [vmem:[%s1737 + $0x60] sm:$0xff]
    %v1751 = vld [vmem:[%s1737 + $0x68] sm:$0xff]
    %v1752 = vld [vmem:[%s1737 + $0x70] sm:$0xff]
    %v1753 = vld [vmem:[%s1737 + $0x78] sm:$0xff]
    %v1754 = vld [vmem:[%s1737 + $0x80] sm:$0xff]
    %v1755 = vld [vmem:[%s1737 + $0x88] sm:$0xff]
    %v1756 = vld [vmem:[%s1737 + $0x90] sm:$0xff]
    %v1757 = vld [vmem:[%s1737 + $0x98] sm:$0xff]
    %v1758 = vld [vmem:[%s1737 + $0xa0] sm:$0xff]
    %v1759 = vld [vmem:[%s1737 + $0xa8] sm:$0xff]
    %v1760 = vld [vmem:[%s1737 + $0xb0] sm:$0xff]
    %v1761 = vld [vmem:[%s1737 + $0xb8] sm:$0xff]
    %v1762 = vld [vmem:[%s1737 + $0xc0] sm:$0xff]
    %v1763 = vld [vmem:[%s1737 + $0xc8] sm:$0xff]
    %v1764 = vld [vmem:[%s1737 + $0xd0] sm:$0xff]
    %v1765 = vld [vmem:[%s1737 + $0xd8] sm:$0xff]
    %v1766 = vld [vmem:[%s1737 + $0xe0] sm:$0xff]
    %v1767 = vld [vmem:[%s1737 + $0xe8] sm:$0xff]
    %v1768 = vld [vmem:[%s1737 + $0xf0] sm:$0xff]
    %v1769 = vld [vmem:[%s1737 + $0xf8] sm:$0xff]
    %v1770 = vpack.c.bf16 %v1702, %v1702
    %v1771 = vpack.c.bf16 %v1703, %v1703
    %v1772 = vlaneseq
    %v1773 = vshrl.u32 %v1772, 7
    %v1774 = vsub.s32 3, %v1773
    %v1775 = vrot.slane %v1128, %v1774
    %v1776 = vlaneseq
    %v1777 = vshrl.u32 %v1776, 7
    %v1778 = vsub.s32 3, %v1777
    %v1779 = vrot.slane %v1129, %v1778
    %v1812 = vunpack.c.l.b16 %v1705
    %v1813 = vunpack.c.h.b16 %v1705
    %v1814 = vunpack.c.l.b16 %v1706
    %v1815 = vunpack.c.h.b16 %v1706
    %v1816 = vunpack.c.l.b16 %v1707
    %v1817 = vunpack.c.h.b16 %v1707
    %v1818 = vunpack.c.l.b16 %v1708
    %v1819 = vunpack.c.h.b16 %v1708
    %v1820 = vunpack.c.l.b16 %v1709
    %v1821 = vunpack.c.h.b16 %v1709
    %v1822 = vunpack.c.l.b16 %v1710
    %v1823 = vunpack.c.h.b16 %v1710
    %v1824 = vunpack.c.l.b16 %v1711
    %v1825 = vunpack.c.h.b16 %v1711
    %v1826 = vunpack.c.l.b16 %v1712
    %v1827 = vunpack.c.h.b16 %v1712
    %v1828 = vunpack.c.l.b16 %v1713
    %v1829 = vunpack.c.h.b16 %v1713
    %v1830 = vunpack.c.l.b16 %v1714
    %v1831 = vunpack.c.h.b16 %v1714
    %v1832 = vunpack.c.l.b16 %v1715
    %v1833 = vunpack.c.h.b16 %v1715
    %v1834 = vunpack.c.l.b16 %v1716
    %v1835 = vunpack.c.h.b16 %v1716
    %v1836 = vunpack.c.l.b16 %v1717
    %v1837 = vunpack.c.h.b16 %v1717
    %v1838 = vunpack.c.l.b16 %v1718
    %v1839 = vunpack.c.h.b16 %v1718
    %v1840 = vunpack.c.l.b16 %v1719
    %v1841 = vunpack.c.h.b16 %v1719
    %v1842 = vunpack.c.l.b16 %v1720
    %v1843 = vunpack.c.h.b16 %v1720
    %v1844 = vunpack.c.l.b16 %v1721
    %v1845 = vunpack.c.h.b16 %v1721
    %v1846 = vunpack.c.l.b16 %v1722
    %v1847 = vunpack.c.h.b16 %v1722
    %v1848 = vunpack.c.l.b16 %v1723
    %v1849 = vunpack.c.h.b16 %v1723
    %v1850 = vunpack.c.l.b16 %v1724
    %v1851 = vunpack.c.h.b16 %v1724
    %v1852 = vunpack.c.l.b16 %v1725
    %v1853 = vunpack.c.h.b16 %v1725
    %v1854 = vunpack.c.l.b16 %v1726
    %v1855 = vunpack.c.h.b16 %v1726
    %v1856 = vunpack.c.l.b16 %v1727
    %v1857 = vunpack.c.h.b16 %v1727
    %v1858 = vunpack.c.l.b16 %v1728
    %v1859 = vunpack.c.h.b16 %v1728
    %v1860 = vunpack.c.l.b16 %v1729
    %v1861 = vunpack.c.h.b16 %v1729
    %v1862 = vunpack.c.l.b16 %v1730
    %v1863 = vunpack.c.h.b16 %v1730
    %v1864 = vunpack.c.l.b16 %v1731
    %v1865 = vunpack.c.h.b16 %v1731
    %v1866 = vunpack.c.l.b16 %v1732
    %v1867 = vunpack.c.h.b16 %v1732
    %v1868 = vunpack.c.l.b16 %v1733
    %v1869 = vunpack.c.h.b16 %v1733
    %v1870 = vunpack.c.l.b16 %v1734
    %v1871 = vunpack.c.h.b16 %v1734
    %v1872 = vunpack.c.l.b16 %v1735
    %v1873 = vunpack.c.h.b16 %v1735
    %v1874 = vunpack.c.l.b16 %v1736
    %v1875 = vunpack.c.h.b16 %v1736
    %v1876 = vpack.c.b16 %v1814, %v1812
    %v1877 = vpack.c.b16 %v1815, %v1813
    %v1878 = vpack.c.b16 %v1818, %v1816
    %v1879 = vpack.c.b16 %v1819, %v1817
    %v1880 = vpack.c.b16 %v1822, %v1820
    %v1881 = vpack.c.b16 %v1823, %v1821
    %v1882 = vpack.c.b16 %v1826, %v1824
    %v1883 = vpack.c.b16 %v1827, %v1825
    %v1884 = vpack.c.b16 %v1830, %v1828
    %v1885 = vpack.c.b16 %v1831, %v1829
    %v1886 = vpack.c.b16 %v1834, %v1832
    %v1887 = vpack.c.b16 %v1835, %v1833
    %v1888 = vpack.c.b16 %v1838, %v1836
    %v1889 = vpack.c.b16 %v1839, %v1837
    %v1890 = vpack.c.b16 %v1842, %v1840
    %v1891 = vpack.c.b16 %v1843, %v1841
    %v1892 = vpack.c.b16 %v1846, %v1844
    %v1893 = vpack.c.b16 %v1847, %v1845
    %v1894 = vpack.c.b16 %v1850, %v1848
    %v1895 = vpack.c.b16 %v1851, %v1849
    %v1896 = vpack.c.b16 %v1854, %v1852
    %v1897 = vpack.c.b16 %v1855, %v1853
    %v1898 = vpack.c.b16 %v1858, %v1856
    %v1899 = vpack.c.b16 %v1859, %v1857
    %v1900 = vpack.c.b16 %v1862, %v1860
    %v1901 = vpack.c.b16 %v1863, %v1861
    %v1902 = vpack.c.b16 %v1866, %v1864
    %v1903 = vpack.c.b16 %v1867, %v1865
    %v1904 = vpack.c.b16 %v1870, %v1868
    %v1905 = vpack.c.b16 %v1871, %v1869
    %v1906 = vpack.c.b16 %v1874, %v1872
    %v1907 = vpack.c.b16 %v1875, %v1873
    %1940 = vmatprep.subr.bf16.mxu0 %v1891
    %1941 = vmatpush1.bf16.msra.mxu0 %v1890
    %1942 = vmatprep.subr.bf16.mxu0 %v1889
    %1943 = vmatpush1.bf16.msra.mxu0 %v1888
    %1944 = vmatprep.subr.bf16.mxu0 %v1887
    %1945 = vmatpush1.bf16.msra.mxu0 %v1886
    %1946 = vmatprep.subr.bf16.mxu0 %v1885
    %1947 = vmatpush1.bf16.msra.mxu0 %v1884
    %1948 = vmatprep.subr.bf16.mxu0 %v1883
    %1949 = vmatpush1.bf16.msra.mxu0 %v1882
    %1950 = vmatprep.subr.bf16.mxu0 %v1881
    %1951 = vmatpush1.bf16.msra.mxu0 %v1880
    %1952 = vmatprep.subr.bf16.mxu0 %v1879
    %1953 = vmatpush1.bf16.msra.mxu0 %v1878
    %1954 = vmatprep.subr.bf16.mxu0 %v1877
    %1955 = vmatpush1.bf16.msra.mxu0 %v1876
    %1956 = vmatprep.subr.bf16.mxu0 %v1907
    %1957 = vmatpush2.bf16.msra.mxu0 %v1906
    %1958 = vmatprep.subr.bf16.mxu0 %v1905
    %1959 = vmatpush2.bf16.msra.mxu0 %v1904
    %1960 = vmatprep.subr.bf16.mxu0 %v1903
    %1961 = vmatpush2.bf16.msra.mxu0 %v1902
    %1962 = vmatprep.subr.bf16.mxu0 %v1901
    %1963 = vmatpush2.bf16.msra.mxu0 %v1900
    %1964 = vmatprep.subr.bf16.mxu0 %v1899
    %1965 = vmatpush2.bf16.msra.mxu0 %v1898
    %1966 = vmatprep.subr.bf16.mxu0 %v1897
    %1967 = vmatpush2.bf16.msra.mxu0 %v1896
    %1968 = vmatprep.subr.bf16.mxu0 %v1895
    %1969 = vmatpush2.bf16.msra.mxu0 %v1894
    %1970 = vmatprep.subr.bf16.mxu0 %v1893
    %1971 = vmatpush2.bf16.msra.mxu0 %v1892
    %1972 = vmatprep.mubr.bf16.mxu0 %v1771
    %1973 = vmatmul.mubr.bf16.gmra.mxu0 %v1770
    %v1974 = vpop.f32.mrf.mxu0
    %v1975 = vadd.f32 %v1775, %v1974
    %v1976 = vpop.f32.mrf.mxu0
    %v1977 = vadd.f32 %v1779, %v1976
    %v1978 = vpop.f32.mrf.mxu0
    %v1979 = vpop.f32.mrf.mxu0
    %1980 = vdwg.mxu0
    %v1981 = vmax.f32 %v1975, 0.0
    %v1982 = vmax.f32 %v1977, 0.0
    %v1983 = vpack.c.bf16 %v1981, %v1981
    %v1984 = vpack.c.bf16 %v1982, %v1982
    %v1985 = vlaneseq
    %v1986 = vshrl.u32 %v1985, 7
    %v1987 = vsub.s32 4, %v1986
    %v1988 = vrot.slane %v1128, %v1987
    %v1989 = vlaneseq
    %v1990 = vshrl.u32 %v1989, 7
    %v1991 = vsub.s32 4, %v1990
    %v1992 = vrot.slane %v1129, %v1991
    %v2025 = vunpack.c.l.b16 %v1738
    %v2026 = vunpack.c.h.b16 %v1738
    %v2027 = vunpack.c.l.b16 %v1739
    %v2028 = vunpack.c.h.b16 %v1739
    %v2029 = vunpack.c.l.b16 %v1740
    %v2030 = vunpack.c.h.b16 %v1740
    %v2031 = vunpack.c.l.b16 %v1741
    %v2032 = vunpack.c.h.b16 %v1741
    %v2033 = vunpack.c.l.b16 %v1742
    %v2034 = vunpack.c.h.b16 %v1742
    %v2035 = vunpack.c.l.b16 %v1743
    %v2036 = vunpack.c.h.b16 %v1743
    %v2037 = vunpack.c.l.b16 %v1744
    %v2038 = vunpack.c.h.b16 %v1744
    %v2039 = vunpack.c.l.b16 %v1745
    %v2040 = vunpack.c.h.b16 %v1745
    %v2041 = vunpack.c.l.b16 %v1746
    %v2042 = vunpack.c.h.b16 %v1746
    %v2043 = vunpack.c.l.b16 %v1747
    %v2044 = vunpack.c.h.b16 %v1747
    %v2045 = vunpack.c.l.b16 %v1748
    %v2046 = vunpack.c.h.b16 %v1748
    %v2047 = vunpack.c.l.b16 %v1749
    %v2048 = vunpack.c.h.b16 %v1749
    %v2049 = vunpack.c.l.b16 %v1750
    %v2050 = vunpack.c.h.b16 %v1750
    %v2051 = vunpack.c.l.b16 %v1751
    %v2052 = vunpack.c.h.b16 %v1751
    %v2053 = vunpack.c.l.b16 %v1752
    %v2054 = vunpack.c.h.b16 %v1752
    %v2055 = vunpack.c.l.b16 %v1753
    %v2056 = vunpack.c.h.b16 %v1753
    %v2057 = vunpack.c.l.b16 %v1754
    %v2058 = vunpack.c.h.b16 %v1754
    %v2059 = vunpack.c.l.b16 %v1755
    %v2060 = vunpack.c.h.b16 %v1755
    %v2061 = vunpack.c.l.b16 %v1756
    %v2062 = vunpack.c.h.b16 %v1756
    %v2063 = vunpack.c.l.b16 %v1757
    %v2064 = vunpack.c.h.b16 %v1757
    %v2065 = vunpack.c.l.b16 %v1758
    %v2066 = vunpack.c.h.b16 %v1758
    %v2067 = vunpack.c.l.b16 %v1759
    %v2068 = vunpack.c.h.b16 %v1759
    %v2069 = vunpack.c.l.b16 %v1760
    %v2070 = vunpack.c.h.b16 %v1760
    %v2071 = vunpack.c.l.b16 %v1761
    %v2072 = vunpack.c.h.b16 %v1761
    %v2073 = vunpack.c.l.b16 %v1762
    %v2074 = vunpack.c.h.b16 %v1762
    %v2075 = vunpack.c.l.b16 %v1763
    %v2076 = vunpack.c.h.b16 %v1763
    %v2077 = vunpack.c.l.b16 %v1764
    %v2078 = vunpack.c.h.b16 %v1764
    %v2079 = vunpack.c.l.b16 %v1765
    %v2080 = vunpack.c.h.b16 %v1765
    %v2081 = vunpack.c.l.b16 %v1766
    %v2082 = vunpack.c.h.b16 %v1766
    %v2083 = vunpack.c.l.b16 %v1767
    %v2084 = vunpack.c.h.b16 %v1767
    %v2085 = vunpack.c.l.b16 %v1768
    %v2086 = vunpack.c.h.b16 %v1768
    %v2087 = vunpack.c.l.b16 %v1769
    %v2088 = vunpack.c.h.b16 %v1769
    %v2089 = vpack.c.b16 %v2027, %v2025
    %v2090 = vpack.c.b16 %v2028, %v2026
    %v2091 = vpack.c.b16 %v2031, %v2029
    %v2092 = vpack.c.b16 %v2032, %v2030
    %v2093 = vpack.c.b16 %v2035, %v2033
    %v2094 = vpack.c.b16 %v2036, %v2034
    %v2095 = vpack.c.b16 %v2039, %v2037
    %v2096 = vpack.c.b16 %v2040, %v2038
    %v2097 = vpack.c.b16 %v2043, %v2041
    %v2098 = vpack.c.b16 %v2044, %v2042
    %v2099 = vpack.c.b16 %v2047, %v2045
    %v2100 = vpack.c.b16 %v2048, %v2046
    %v2101 = vpack.c.b16 %v2051, %v2049
    %v2102 = vpack.c.b16 %v2052, %v2050
    %v2103 = vpack.c.b16 %v2055, %v2053
    %v2104 = vpack.c.b16 %v2056, %v2054
    %v2105 = vpack.c.b16 %v2059, %v2057
    %v2106 = vpack.c.b16 %v2060, %v2058
    %v2107 = vpack.c.b16 %v2063, %v2061
    %v2108 = vpack.c.b16 %v2064, %v2062
    %v2109 = vpack.c.b16 %v2067, %v2065
    %v2110 = vpack.c.b16 %v2068, %v2066
    %v2111 = vpack.c.b16 %v2071, %v2069
    %v2112 = vpack.c.b16 %v2072, %v2070
    %v2113 = vpack.c.b16 %v2075, %v2073
    %v2114 = vpack.c.b16 %v2076, %v2074
    %v2115 = vpack.c.b16 %v2079, %v2077
    %v2116 = vpack.c.b16 %v2080, %v2078
    %v2117 = vpack.c.b16 %v2083, %v2081
    %v2118 = vpack.c.b16 %v2084, %v2082
    %v2119 = vpack.c.b16 %v2087, %v2085
    %v2120 = vpack.c.b16 %v2088, %v2086
    %2153 = vmatprep.subr.bf16.mxu0 %v2104
    %2154 = vmatpush1.bf16.msra.mxu0 %v2103
    %2155 = vmatprep.subr.bf16.mxu0 %v2102
    %2156 = vmatpush1.bf16.msra.mxu0 %v2101
    %2157 = vmatprep.subr.bf16.mxu0 %v2100
    %2158 = vmatpush1.bf16.msra.mxu0 %v2099
    %2159 = vmatprep.subr.bf16.mxu0 %v2098
    %2160 = vmatpush1.bf16.msra.mxu0 %v2097
    %2161 = vmatprep.subr.bf16.mxu0 %v2096
    %2162 = vmatpush1.bf16.msra.mxu0 %v2095
    %2163 = vmatprep.subr.bf16.mxu0 %v2094
    %2164 = vmatpush1.bf16.msra.mxu0 %v2093
    %2165 = vmatprep.subr.bf16.mxu0 %v2092
    %2166 = vmatpush1.bf16.msra.mxu0 %v2091
    %2167 = vmatprep.subr.bf16.mxu0 %v2090
    %2168 = vmatpush1.bf16.msra.mxu0 %v2089
    %2169 = vmatprep.subr.bf16.mxu0 %v2120
    %2170 = vmatpush2.bf16.msra.mxu0 %v2119
    %2171 = vmatprep.subr.bf16.mxu0 %v2118
    %2172 = vmatpush2.bf16.msra.mxu0 %v2117
    %2173 = vmatprep.subr.bf16.mxu0 %v2116
    %2174 = vmatpush2.bf16.msra.mxu0 %v2115
    %2175 = vmatprep.subr.bf16.mxu0 %v2114
    %2176 = vmatpush2.bf16.msra.mxu0 %v2113
    %2177 = vmatprep.subr.bf16.mxu0 %v2112
    %2178 = vmatpush2.bf16.msra.mxu0 %v2111
    %2179 = vmatprep.subr.bf16.mxu0 %v2110
    %2180 = vmatpush2.bf16.msra.mxu0 %v2109
    %2181 = vmatprep.subr.bf16.mxu0 %v2108
    %2182 = vmatpush2.bf16.msra.mxu0 %v2107
    %2183 = vmatprep.subr.bf16.mxu0 %v2106
    %2184 = vmatpush2.bf16.msra.mxu0 %v2105
    %2185 = vmatprep.mubr.bf16.mxu0 %v1984
    %2186 = vmatmul.mubr.bf16.gmra.mxu0 %v1983
    %v2187 = vpop.f32.mrf.mxu0
    %v2188 = vadd.f32 %v1988, %v2187
    %v2189 = vpop.f32.mrf.mxu0
    %v2190 = vadd.f32 %v1992, %v2189
    %v2191 = vpop.f32.mrf.mxu0
    %v2192 = vpop.f32.mrf.mxu0
    %2193 = vdwg.mxu0
    %v2194 = vadd.f32 %v1702, %v2188
    %v2195 = vadd.f32 %v1703, %v2190
    %v2196 = vmax.f32 %v2194, 0.0
    %v2197 = vmax.f32 %v2195, 0.0
    %v2198 = vlaneseq
    %v2199 = vshrl.u32 %v2198, 7
    %v2200 = vsub.s32 5, %v2199
    %v2201 = vrot.slane %v1128, %v2200
    %v2202 = vlaneseq
    %v2203 = vshrl.u32 %v2202, 7
    %v2204 = vsub.s32 5, %v2203
    %v2205 = vrot.slane %v1129, %v2204
    %v2206 = vmul.f32 %v2196, %v2201
    %v2207 = vmul.f32 %v2197, %v2205
    %v2208 = vadd.f32 %v2206, %v2207
    %2209 = vadd.xlane.f32.xlu0 %v2208
    %v2210 = vpop.xlane.xlu0 %2209
    %v2211 = vlaneseq
    %v2212 = vshrl.u32 %v2211, 7
    %v2213 = vsub.s32 6, %v2212
    %v2214 = vrot.slane %v1128, %v2213
    %v2215 = vadd.f32 %v2210, %v2214
    %s2216 = scalar_lea.vmem %s4, 8
    %2217 = vst.msk [vmem:[%s2216] sm:$0xff] %vm1125, %v2215
    // Predicated region
    $region22: #{tpu_custom_call.1} parent=1 // pred_check
      _
    $region23: #{tpu_custom_call.1} parent=1 // pred_check_branch
      %2219 = sbr.rel (0) target = $region25
    $region24: #{tpu_custom_call.1} parent=1 // pred_region
      _
    $region25: #{tpu_custom_call.1} parent=1 // pred_fallthru
      _
    // Predicated region
    $region26: #{tpu_custom_call.1} parent=1 // pred_check
      _
    $region27: #{tpu_custom_call.1} parent=1 // pred_check_branch
      %2221 = sbr.rel (0) target = $region29
    $region28: #{tpu_custom_call.1} parent=1 // pred_region
      _
    $region29: #{tpu_custom_call.1} parent=1 // pred_fallthru
      _
    %2222 = vsyncpa [#allocation3], 1

</llo_original>
